<compile_context>
chip_gen: v6e
topology: v6e:2x2x1
jax: 0.10.0
libtpu: 0.0.40
codegen_flags: <defaults>
</compile_context>

<pallas_src>
import functools

import jax
import jax.numpy as jnp
import numpy as np
from jax.experimental import pallas as pl
from jax.experimental.pallas import tpu as pltpu


# ----------------------------------------------------------------------------
# Per-generation tiling / VMEM defaults
# ----------------------------------------------------------------------------
@functools.lru_cache(maxsize=1)
def _tpu_defaults():
    """(vmem_limit_bytes, q_tile_cap) chosen per TPU generation."""
    try:
        vmem_cap = int(pltpu.get_tpu_info().vmem_capacity_bytes)
    except Exception:
        return 32 * 1024 * 1024, 256          # conservative fallback
    if vmem_cap >= 96 * 1024 * 1024:          # v5e / v6e class: 128 MiB VMEM
        return 96 * 1024 * 1024, 512
    return 40 * 1024 * 1024, 256              # v7x class: 64 MiB physical VMEM


def _seq_tile(s, cap):
    """Largest q-tile <= cap that divides S and is a multiple of 8."""
    if s <= cap:
        return s
    t = cap
    while t >= 8:
        if s % t == 0:
            return t
        t -= 8
    return s


def _rep_spec(arr):
    """Full-array block, resident (constant block index) across the (b, t) grid."""
    nd = arr.ndim
    return pl.BlockSpec(arr.shape, lambda b, t, _nd=nd: (0,) * _nd)


# ----------------------------------------------------------------------------
# Pallas kernels
# ----------------------------------------------------------------------------
def _mha_ln_kernel(*refs, n_heads, d_k, d_v, eps, mask_mode, return_attn):
    """Fused MHA (k == v) + residual(q) + LayerNorm for one (batch, q-tile) grid
    point.  grid = (B, n_q_tiles); axis 1 is "arbitrary" so the head-major K/V
    projection scratch computed at q-tile 0 is reused by later q-tiles."""
    bf16 = jnp.bfloat16
    it = iter(refs)
    q_ref = next(it)                      # (1, tq, D)  f32 (query + residual)
    kv_ref = next(it)                     # (1, Sk, D)  bf16
    mask_ref = next(it) if mask_mode == "tensor" else None   # (1, tq, Sk) bf16 0/1
    wq_ref = next(it); bq_ref = next(it)
    wk_ref = next(it); bk_ref = next(it)
    wv_ref = next(it); bv_ref = next(it)
    wo_ref = next(it); bo_ref = next(it)
    g_ref = next(it); b_ref = next(it)
    out_ref = next(it)                    # (1, tq, D)  f32
    attn_ref = next(it) if return_attn else None   # (1, H, tq, Sk)
    kproj_ref = next(it)                  # (H, Sk, d_k) bf16 scratch
    vproj_ref = next(it)                  # (H, Sk, d_v) bf16 scratch
    ctx_ref = next(it)                    # (tq, H*d_v)  bf16 scratch

    tq = q_ref.shape[1]
    sk = kv_ref.shape[1]

    # --- K/V projections once per batch element: one full-width bf16 matmul each,
    #     then split into head-major bf16 scratch blocks.
    @pl.when(pl.program_id(1) == 0)
    def _():
        kv = kv_ref[0]                                               # (Sk, D) bf16
        kp = jnp.dot(kv, wk_ref[...], preferred_element_type=jnp.float32) + bk_ref[...]
        vp = jnp.dot(kv, wv_ref[...], preferred_element_type=jnp.float32) + bv_ref[...]
        for h in range(n_heads):
            kproj_ref[h] = kp[:, h * d_k:(h + 1) * d_k].astype(bf16)
            vproj_ref[h] = vp[:, h * d_v:(h + 1) * d_v].astype(bf16)

    # --- Q projection (full width) for this q-tile; scale folded into Q.
    q = q_ref[0]                                                     # (tq, D) f32
    scale = 1.0 / float(np.sqrt(d_k))
    Q = (jnp.dot(q.astype(bf16), wq_ref[...], preferred_element_type=jnp.float32)
         + bq_ref[...]) * scale                                      # (tq, H*d_k) f32
    Qb = Q.astype(bf16)

    # --- additive mask (f32), shared by all heads
    if mask_mode == "tensor":
        add_mask = (mask_ref[0].astype(jnp.float32) - 1.0) * 1e9     # (tq, Sk)
    elif mask_mode == "causal":
        row = (jax.lax.broadcasted_iota(jnp.int32, (tq, sk), 0)
               + pl.program_id(1) * tq)
        col = jax.lax.broadcasted_iota(jnp.int32, (tq, sk), 1)
        add_mask = jnp.where(col <= row, 0.0, -1e9).astype(jnp.float32)
    else:  # "none"
        add_mask = None

    # --- per-head scores / softmax / context.  Projections are hoisted above; the
    #     per-head shapes here are inherent to MHA.  K/V are already head-major so
    #     there are no lane-slice extracts on the (Sk, .) operands and no concat.
    for h in range(n_heads):
        qh = Qb[:, h * d_k:(h + 1) * d_k]                            # (tq, d_k) bf16
        s = jax.lax.dot_general(qh, kproj_ref[h], (((1,), (1,)), ((), ())),
                                preferred_element_type=jnp.float32)  # (tq, Sk) f32
        if add_mask is not None:
            s = s + add_mask
        s = s - jnp.max(s, axis=-1, keepdims=True)
        p = jnp.exp(s)
        attn = p * pl.reciprocal(jnp.sum(p, axis=-1, keepdims=True), approx=True)
        if return_attn:
            attn_ref[0, h, :, :] = attn.astype(attn_ref.dtype)       # direct layout
        ctx_ref[:, h * d_v:(h + 1) * d_v] = jnp.dot(
            attn.astype(bf16), vproj_ref[h],
            preferred_element_type=jnp.float32).astype(bf16)

    # --- single wide output projection + residual + LayerNorm epilogue (f32 stats)
    o = (jnp.dot(ctx_ref[...], wo_ref[...], preferred_element_type=jnp.float32)
         + bo_ref[...])                                              # (tq, D) f32
    y = o + q
    mean = jnp.mean(y, axis=-1, keepdims=True)
    var = jnp.mean((y - mean) ** 2, axis=-1, keepdims=True)
    out_ref[0] = (y - mean) * jax.lax.rsqrt(var + eps) * g_ref[...] + b_ref[...]


def _ffn_ln_kernel(x_ref, w1_ref, b1_ref, w2_ref, b2_ref,
                   gf_ref, betaf_ref, g_ref, b_ref, out_ref,
                   *, eps_ffn, eps_ln):
    """FFN (linear-relu-linear + residual + LN eps=1e-6) fused with the final
    residual + shared LayerNorm (eps=1e-5).  Weights arrive pre-cast to bf16."""
    bf16 = jnp.bfloat16
    x = x_ref[0]                                                     # (tq, D) f32

    h = (jnp.dot(x.astype(bf16), w1_ref[...], preferred_element_type=jnp.float32)
         + b1_ref[...])
    h = jnp.maximum(h, 0.0)
    y = (jnp.dot(h.astype(bf16), w2_ref[...], preferred_element_type=jnp.float32)
         + b2_ref[...] + x)

    # FFN-internal LayerNorm (eps=1e-6)
    m = jnp.mean(y, axis=-1, keepdims=True)
    v = jnp.mean((y - m) ** 2, axis=-1, keepdims=True)
    f = (y - m) * jax.lax.rsqrt(v + eps_ffn) * gf_ref[...] + betaf_ref[...]

    # final residual + shared LayerNorm (eps=1e-5)
    z = x + f
    m2 = jnp.mean(z, axis=-1, keepdims=True)
    v2 = jnp.mean((z - m2) ** 2, axis=-1, keepdims=True)
    out_ref[0] = (z - m2) * jax.lax.rsqrt(v2 + eps_ln) * g_ref[...] + b_ref[...]


# ----------------------------------------------------------------------------
# Wrappers (pallas_call plumbing)
# ----------------------------------------------------------------------------
def mha(q, kv, mask, w, ln_g, ln_b, *, n_heads, d_k, d_v, eps,
        mask_mode="tensor", return_attn=True, attn_dtype=jnp.bfloat16):
    """Multi-head attention (k == v) + residual(q) + LayerNorm, one pallas_call.

    mask_mode: "tensor" (DMA the 0/1 mask, bf16), "causal" (generate in-kernel,
    no mask DMA), "none" (skip masking).  Attention probs are returned directly in
    (B, H, Sq, Sk) layout (bf16 by default); set return_attn=False to drop them.
    """
    B, Sq, D = q.shape
    Sk = kv.shape[1]
    vmem_limit, tile_cap = _tpu_defaults()
    tq = _seq_tile(Sq, tile_cap)
    n_t = Sq // tq
    bf16 = jnp.bfloat16

    kernel = functools.partial(_mha_ln_kernel, n_heads=n_heads, d_k=d_k, d_v=d_v,
                               eps=eps, mask_mode=mask_mode, return_attn=return_attn)

    in_specs = [
        pl.BlockSpec((1, tq, D), lambda b, t: (b, t, 0)),   # q tile (f32, residual)
        pl.BlockSpec((1, Sk, D), lambda b, t: (b, 0, 0)),   # kv (bf16, const in t)
    ]
    args = [q, kv.astype(bf16)]
    if mask_mode == "tensor":
        if mask is None:
            raise ValueError("mask_mode='tensor' requires a mask tensor")
        in_specs.append(pl.BlockSpec((1, tq, Sk), lambda b, t: (b, t, 0)))
        args.append(mask.astype(bf16))
    in_specs += [_rep_spec(w["wq"]), _rep_spec(w["bq"]),
                 _rep_spec(w["wk"]), _rep_spec(w["bk"]),
                 _rep_spec(w["wv"]), _rep_spec(w["bv"]),
                 _rep_spec(w["wo"]), _rep_spec(w["bo"]),
                 _rep_spec(ln_g), _rep_spec(ln_b)]
    args += [w["wq"], w["bq"], w["wk"], w["bk"], w["wv"], w["bv"],
             w["wo"], w["bo"], ln_g, ln_b]

    out_spec_x = pl.BlockSpec((1, tq, D), lambda b, t: (b, t, 0))
    if return_attn:
        out_shape = (jax.ShapeDtypeStruct((B, Sq, D), jnp.float32),
                     jax.ShapeDtypeStruct((B, n_heads, Sq, Sk), attn_dtype))
        out_specs = (out_spec_x,
                     pl.BlockSpec((1, n_heads, tq, Sk), lambda b, t: (b, 0, t, 0)))
    else:
        out_shape = jax.ShapeDtypeStruct((B, Sq, D), jnp.float32)
        out_specs = out_spec_x

    scratch_shapes = [pltpu.VMEM((n_heads, Sk, d_k), bf16),   # K proj (head-major)
                      pltpu.VMEM((n_heads, Sk, d_v), bf16),   # V proj (head-major)
                      pltpu.VMEM((tq, n_heads * d_v), bf16)]  # per-tile context

    result = pl.pallas_call(
        kernel,
        out_shape=out_shape,
        grid=(B, n_t),
        in_specs=in_specs,
        out_specs=out_specs,
        scratch_shapes=scratch_shapes,
        compiler_params=pltpu.CompilerParams(
            dimension_semantics=("parallel", "arbitrary"),
            vmem_limit_bytes=vmem_limit),
    )(*args)

    if return_attn:
        return result[0], result[1]
    return result, None


def feed_forward(x, w, ln_g, ln_b, *, eps_ffn, eps_ln):
    """FFN (with its own LN) fused with the final residual + shared LN."""
    B, S, D = x.shape
    vmem_limit, tile_cap = _tpu_defaults()
    tq = _seq_tile(S, tile_cap)
    n_t = S // tq

    kernel = functools.partial(_ffn_ln_kernel, eps_ffn=eps_ffn, eps_ln=eps_ln)
    return pl.pallas_call(
        kernel,
        out_shape=jax.ShapeDtypeStruct((B, S, D), jnp.float32),
        grid=(B, n_t),
        in_specs=[
            pl.BlockSpec((1, tq, D), lambda b, t: (b, t, 0)),
            _rep_spec(w["w1"]), _rep_spec(w["b1"]),
            _rep_spec(w["w2"]), _rep_spec(w["b2"]),
            _rep_spec(w["g"]), _rep_spec(w["b"]),
            _rep_spec(ln_g), _rep_spec(ln_b),
        ],
        out_specs=pl.BlockSpec((1, tq, D), lambda b, t: (b, t, 0)),
        compiler_params=pltpu.CompilerParams(
            dimension_semantics=("parallel", "parallel"),
            vmem_limit_bytes=vmem_limit),
    )(x, w["w1"], w["b1"], w["w2"], w["b2"], w["g"], w["b"], ln_g, ln_b)


def prepare_decoder_params(params):
    """One-time bf16 pre-cast of all matmul weights (biases / LN params stay f32)."""
    bf16 = jnp.bfloat16

    def cast_attn(a):
        a = dict(a)
        for k in ("wq", "wk", "wv", "wo"):
            a[k] = a[k].astype(bf16)
        return a

    p = dict(params)
    p["self_attn"] = cast_attn(params["self_attn"])
    p["cross_attn"] = cast_attn(params["cross_attn"])
    ffn = dict(params["ffn"])
    ffn["w1"] = ffn["w1"].astype(bf16)
    ffn["w2"] = ffn["w2"].astype(bf16)
    p["ffn"] = ffn
    return p


def decoder_layer(params, dec_input, dec_attn_mask, enc_output, enc_dec_attn_mask,
                  *, n_heads, d_k, d_v, d_model,
                  self_mask_mode="tensor", cross_mask_mode="tensor",
                  return_attn=True, attn_dtype=jnp.bfloat16):
    """Forward pass of the PyTorch DecoderLayer (eval mode, dropout = identity)."""
    ln_g, ln_b = params["ln_g"], params["ln_b"]

    # 1) masked self-attention + residual + shared LayerNorm (fused)
    dec_out, dec_attn = mha(dec_input, dec_input, dec_attn_mask,
                            params["self_attn"], ln_g, ln_b,
                            n_heads=n_heads, d_k=d_k, d_v=d_v, eps=1e-5,
                            mask_mode=self_mask_mode, return_attn=return_attn,
                            attn_dtype=attn_dtype)

    # 2) encoder-decoder attention (d_k = d_v = d_model) + residual + LN (fused)
    out, enc_dec_attn = mha(dec_out, enc_output, enc_dec_attn_mask,
                            params["cross_attn"], ln_g, ln_b,
                            n_heads=n_heads, d_k=d_model, d_v=d_model, eps=1e-5,
                            mask_mode=cross_mask_mode, return_attn=return_attn,
                            attn_dtype=attn_dtype)

    # 3) FFN (own LN eps=1e-6) + residual + shared LN eps=1e-5, all fused
    out = feed_forward(out, params["ffn"], ln_g, ln_b, eps_ffn=1e-6, eps_ln=1e-5)
    return out, dec_attn, enc_dec_attn


# ----------------------------------------------------------------------------
# Plain-JAX reference (f32) for a sanity check
# ----------------------------------------------------------------------------
def _ref_mha(q, k, v, mask, w, n_heads, d_k, d_v):
    B, Sq, D = q.shape
    Sk = k.shape[1]
    Q = (q @ w["wq"] + w["bq"]).reshape(B, Sq, n_heads, d_k).transpose(0, 2, 1, 3)
    K = (k @ w["wk"] + w["bk"]).reshape(B, Sk, n_heads, d_k).transpose(0, 2, 1, 3)
    V = (v @ w["wv"] + w["bv"]).reshape(B, Sk, n_heads, d_v).transpose(0, 2, 1, 3)
    s = jnp.einsum("bhqd,bhkd->bhqk", Q, K) / jnp.sqrt(jnp.float32(d_k))
    s = jnp.where(mask[:, None] == 0.0, -1e9, s)
    a = jax.nn.softmax(s, axis=-1)
    ctx = jnp.einsum("bhqk,bhkd->bhqd", a, V).transpose(0, 2, 1, 3).reshape(B, Sq, n_heads * d_v)
    return ctx @ w["wo"] + w["bo"], a


def _ref_ln(y, g, b, eps):
    m = jnp.mean(y, axis=-1, keepdims=True)
    v = jnp.mean((y - m) ** 2, axis=-1, keepdims=True)
    return (y - m) * jax.lax.rsqrt(v + eps) * g + b


def _ref_decoder(params, dec_input, dec_mask, enc_output, ed_mask,
                 n_heads, d_k, d_v, d_model):
    o1, a1 = _ref_mha(dec_input, dec_input, dec_input, dec_mask,
                      params["self_attn"], n_heads, d_k, d_v)
    o1 = _ref_ln(o1 + dec_input, params["ln_g"], params["ln_b"], 1e-5)
    o2, a2 = _ref_mha(o1, enc_output, enc_output, ed_mask,
                      params["cross_attn"], n_heads, d_model, d_model)
    o2 = _ref_ln(o2 + o1, params["ln_g"], params["ln_b"], 1e-5)
    f = params["ffn"]
    h = jnp.maximum(o2 @ f["w1"] + f["b1"], 0.0)
    y = _ref_ln(h @ f["w2"] + f["b2"] + o2, f["g"], f["b"], 1e-6)
    o3 = _ref_ln(o2 + y, params["ln_g"], params["ln_b"], 1e-5)
    return o3, a1, a2


# ----------------------------------------------------------------------------
# Parameter construction (deterministic)
# ----------------------------------------------------------------------------
def _linear(key, d_in, d_out):
    kw, kb = jax.random.split(key)
    w = jax.random.normal(kw, (d_in, d_out), jnp.float32) / np.sqrt(d_in)
    b = 0.01 * jax.random.normal(kb, (1, d_out), jnp.float32)
    return w, b


def make_params(key, d_model, n_heads, d_k, d_v, d_ff):
    ks = jax.random.split(key, 10)

    def attn_params(keys, dk, dv):
        wq, bq = _linear(keys[0], d_model, n_heads * dk)
        wk, bk = _linear(keys[1], d_model, n_heads * dk)
        wv, bv = _linear(keys[2], d_model, n_heads * dv)
        wo, bo = _linear(keys[3], n_heads * dv, d_model)
        return dict(wq=wq, bq=bq, wk=wk, bk=bk, wv=wv, bv=bv, wo=wo, bo=bo)

    w1, b1 = _linear(ks[8], d_model, d_ff)
    w2, b2 = _linear(ks[9], d_ff, d_model)
    return dict(
        self_attn=attn_params(ks[0:4], d_k, d_v),
        cross_attn=attn_params(ks[4:8], d_model, d_model),
        ln_g=jnp.ones((1, d_model), jnp.float32),
        ln_b=jnp.zeros((1, d_model), jnp.float32),
        ffn=dict(w1=w1, b1=b1, w2=w2, b2=b2,
                 g=jnp.ones((1, d_model), jnp.float32),
                 b=jnp.zeros((1, d_model), jnp.float32)),
    )


# ----------------------------------------------------------------------------
if __name__ == "__main__":
    # small but TPU-friendly shapes (d_model = 128 lanes, d_ff = 256)
    B, S_dec, S_enc = 2, 16, 16
    d_model, n_heads, d_k, d_v, d_ff = 128, 4, 32, 32, 256

    root = jax.random.PRNGKey(0)
    k_par, k_dec, k_enc = jax.random.split(root, 3)
    params_f32 = make_params(k_par, d_model, n_heads, d_k, d_v, d_ff)
    params = prepare_decoder_params(params_f32)   # bf16 weights, cast once

    dec_input = jax.random.normal(k_dec, (B, S_dec, d_model), jnp.float32)
    enc_output = jax.random.normal(k_enc, (B, S_enc, d_model), jnp.float32)
    # masks: 1.0 = attend, 0.0 = masked (causal for self-attention)
    dec_attn_mask = jnp.broadcast_to(
        jnp.tril(jnp.ones((S_dec, S_dec), jnp.float32)), (B, S_dec, S_dec))
    enc_dec_attn_mask = jnp.ones((B, S_dec, S_enc), jnp.float32)

    run = functools.partial(decoder_layer, params,
                            n_heads=n_heads, d_k=d_k, d_v=d_v, d_model=d_model)

    # general path: runtime mask tensors (matches the PyTorch module signature)
    out, dec_attn, enc_dec_attn = run(dec_input, dec_attn_mask,
                                      enc_output, enc_dec_attn_mask)
    jax.block_until_ready((out, dec_attn, enc_dec_attn))

    # fast path: causal mask synthesized in-kernel, all-ones cross mask skipped
    out_f, dec_attn_f, enc_dec_attn_f = run(dec_input, dec_attn_mask,
                                            enc_output, enc_dec_attn_mask,
                                            self_mask_mode="causal",
                                            cross_mask_mode="none")
    jax.block_until_ready((out_f, dec_attn_f, enc_dec_attn_f))

    # reference in full f32 (precision scoped to the reference only)
    with jax.default_matmul_precision("highest"):
        r_out, r_a1, r_a2 = _ref_decoder(params_f32, dec_input, dec_attn_mask,
                                         enc_output, enc_dec_attn_mask,
                                         n_heads, d_k, d_v, d_model)
        jax.block_until_ready((r_out, r_a1, r_a2))

    def _np(x):
        return np.asarray(jnp.asarray(x, jnp.float32))

    # kernel uses bf16 matmul operands (f32 accumulation) and bf16 attention
    # probabilities, so tolerances are a few 1e-2
    for o, a1, a2 in ((out, dec_attn, enc_dec_attn),
                      (out_f, dec_attn_f, enc_dec_attn_f)):
        assert o.shape == (B, S_dec, d_model)
        assert a1.shape == (B, n_heads, S_dec, S_dec)
        assert a2.shape == (B, n_heads, S_dec, S_enc)
        np.testing.assert_allclose(_np(a1), _np(r_a1), atol=2e-2, rtol=2e-2)
        np.testing.assert_allclose(_np(a2), _np(r_a2), atol=2e-2, rtol=2e-2)
        np.testing.assert_allclose(_np(o), _np(r_out), atol=3e-2, rtol=3e-2)

    print("KERNEL_OK")
</pallas_src>

<mosaic_0001>
module attributes {stable_mosaic.version = 11 : i64} {
  func.func @_mha_ln_kernel(%arg0: i32, %arg1: i32, %arg2: memref<1x16x128xf32, #tpu.memory_space<vmem>>, %arg3: memref<1x16x128xbf16, #tpu.memory_space<vmem>>, %arg4: memref<1x16x16xbf16, #tpu.memory_space<vmem>>, %arg5: memref<128x128xbf16, #tpu.memory_space<vmem>>, %arg6: memref<1x128xf32, #tpu.memory_space<vmem>>, %arg7: memref<128x128xbf16, #tpu.memory_space<vmem>>, %arg8: memref<1x128xf32, #tpu.memory_space<vmem>>, %arg9: memref<128x128xbf16, #tpu.memory_space<vmem>>, %arg10: memref<1x128xf32, #tpu.memory_space<vmem>>, %arg11: memref<128x128xbf16, #tpu.memory_space<vmem>>, %arg12: memref<1x128xf32, #tpu.memory_space<vmem>>, %arg13: memref<1x128xf32, #tpu.memory_space<vmem>>, %arg14: memref<1x128xf32, #tpu.memory_space<vmem>>, %arg15: memref<1x16x128xf32, #tpu.memory_space<vmem>>, %arg16: memref<1x4x16x16xbf16, #tpu.memory_space<vmem>>, %arg17: memref<4x16x32xbf16, #tpu.memory_space<vmem>>, %arg18: memref<4x16x32xbf16, #tpu.memory_space<vmem>>, %arg19: memref<16x128xbf16, #tpu.memory_space<vmem>>) attributes {dimension_semantics = [#tpu.dimension_semantics<parallel>, #tpu.dimension_semantics<arbitrary>], iteration_bounds = array<i64: 2, 1>, scalar_prefetch = 0 : i64, scratch_operands = 3 : i64, tpu.core_type = #tpu.core_type<tc>, window_params = [{transform_indices = @transform_0, window_bounds = array<i64: 1, 16, 128>}, {transform_indices = @transform_1, window_bounds = array<i64: 1, 16, 128>}, {transform_indices = @transform_2, window_bounds = array<i64: 1, 16, 16>}, {pipeline_mode = #tpu.pipeline_mode<synchronous>, transform_indices = @transform_3, window_bounds = array<i64: 128, 128>}, {pipeline_mode = #tpu.pipeline_mode<synchronous>, transform_indices = @transform_4, window_bounds = array<i64: 1, 128>}, {pipeline_mode = #tpu.pipeline_mode<synchronous>, transform_indices = @transform_5, window_bounds = array<i64: 128, 128>}, {pipeline_mode = #tpu.pipeline_mode<synchronous>, transform_indices = @transform_6, window_bounds = array<i64: 1, 128>}, {pipeline_mode = #tpu.pipeline_mode<synchronous>, transform_indices = @transform_7, window_bounds = array<i64: 128, 128>}, {pipeline_mode = #tpu.pipeline_mode<synchronous>, transform_indices = @transform_8, window_bounds = array<i64: 1, 128>}, {pipeline_mode = #tpu.pipeline_mode<synchronous>, transform_indices = @transform_9, window_bounds = array<i64: 128, 128>}, {pipeline_mode = #tpu.pipeline_mode<synchronous>, transform_indices = @transform_10, window_bounds = array<i64: 1, 128>}, {pipeline_mode = #tpu.pipeline_mode<synchronous>, transform_indices = @transform_11, window_bounds = array<i64: 1, 128>}, {pipeline_mode = #tpu.pipeline_mode<synchronous>, transform_indices = @transform_12, window_bounds = array<i64: 1, 128>}, {transform_indices = @transform_13, window_bounds = array<i64: 1, 16, 128>}, {transform_indices = @transform_14, window_bounds = array<i64: 1, 4, 16, 16>}]} {
    %c0_i32 = arith.constant 0 : i32
    %0 = arith.cmpi eq, %arg1, %c0_i32 : i32
    %1 = arith.extui %0 : i1 to i32
    %c0_i32_0 = arith.constant 0 : i32
    %2 = arith.cmpi ne, %1, %c0_i32_0 : i32
    scf.if %2 {
      %c0_90 = arith.constant 0 : index
      %c0_91 = arith.constant 0 : index
      %c0_92 = arith.constant 0 : index
      %155 = vector.load %arg3[%c0_90, %c0_91, %c0_92] : memref<1x16x128xbf16, #tpu.memory_space<vmem>>, vector<1x16x128xbf16>
      %156 = vector.shape_cast %155 : vector<1x16x128xbf16> to vector<16x128xbf16>
      %c0_93 = arith.constant 0 : index
      %c0_94 = arith.constant 0 : index
      %157 = vector.load %arg7[%c0_93, %c0_94] : memref<128x128xbf16, #tpu.memory_space<vmem>>, vector<128x128xbf16>
      %cst_95 = arith.constant dense<0.000000e+00> : vector<16x128xf32>
      %158 = tpu.matmul %156, %157, %cst_95 {dimension_numbers = #tpu.dot_dimension_numbers<[1], [0], [0], [1], [0, 0, 1, 1], [], []>} : vector<16x128xbf16>, vector<128x128xbf16>, vector<16x128xf32> -> vector<16x128xf32>
      %c0_96 = arith.constant 0 : index
      %c0_97 = arith.constant 0 : index
      %159 = vector.load %arg8[%c0_96, %c0_97] : memref<1x128xf32, #tpu.memory_space<vmem>>, vector<1x128xf32>
      %160 = vector.broadcast %159 : vector<1x128xf32> to vector<16x128xf32>
      %161 = arith.addf %158, %160 : vector<16x128xf32>
      %c0_98 = arith.constant 0 : index
      %c0_99 = arith.constant 0 : index
      %162 = vector.load %arg9[%c0_98, %c0_99] : memref<128x128xbf16, #tpu.memory_space<vmem>>, vector<128x128xbf16>
      %cst_100 = arith.constant dense<0.000000e+00> : vector<16x128xf32>
      %163 = tpu.matmul %156, %162, %cst_100 {dimension_numbers = #tpu.dot_dimension_numbers<[1], [0], [0], [1], [0, 0, 1, 1], [], []>} : vector<16x128xbf16>, vector<128x128xbf16>, vector<16x128xf32> -> vector<16x128xf32>
      %c0_101 = arith.constant 0 : index
      %c0_102 = arith.constant 0 : index
      %164 = vector.load %arg10[%c0_101, %c0_102] : memref<1x128xf32, #tpu.memory_space<vmem>>, vector<1x128xf32>
      %165 = vector.broadcast %164 : vector<1x128xf32> to vector<16x128xf32>
      %166 = arith.addf %163, %165 : vector<16x128xf32>
      %167 = vector.extract_strided_slice %161 {offsets = [0, 0], sizes = [16, 32], strides = [1, 1]} : vector<16x128xf32> to vector<16x32xf32>
      %168 = arith.truncf %167 : vector<16x32xf32> to vector<16x32xbf16>
      %c0_103 = arith.constant 0 : index
      %c0_104 = arith.constant 0 : index
      %c0_105 = arith.constant 0 : index
      %169 = vector.load %arg17[%c0_103, %c0_104, %c0_105] : memref<4x16x32xbf16, #tpu.memory_space<vmem>>, vector<1x16x32xbf16>
      %170 = vector.shape_cast %169 : vector<1x16x32xbf16> to vector<16x32xbf16>
      %171 = vector.shape_cast %168 : vector<16x32xbf16> to vector<1x16x32xbf16>
      tpu.vector_store %arg17[%c0_103, %c0_104, %c0_105], %171 {strides = array<i32>} : memref<4x16x32xbf16, #tpu.memory_space<vmem>>, vector<1x16x32xbf16>,
      %172 = vector.extract_strided_slice %166 {offsets = [0, 0], sizes = [16, 32], strides = [1, 1]} : vector<16x128xf32> to vector<16x32xf32>
      %173 = arith.truncf %172 : vector<16x32xf32> to vector<16x32xbf16>
      %c0_106 = arith.constant 0 : index
      %c0_107 = arith.constant 0 : index
      %c0_108 = arith.constant 0 : index
      %174 = vector.load %arg18[%c0_106, %c0_107, %c0_108] : memref<4x16x32xbf16, #tpu.memory_space<vmem>>, vector<1x16x32xbf16>
      %175 = vector.shape_cast %174 : vector<1x16x32xbf16> to vector<16x32xbf16>
      %176 = vector.shape_cast %173 : vector<16x32xbf16> to vector<1x16x32xbf16>
      tpu.vector_store %arg18[%c0_106, %c0_107, %c0_108], %176 {strides = array<i32>} : memref<4x16x32xbf16, #tpu.memory_space<vmem>>, vector<1x16x32xbf16>,
      %177 = vector.extract_strided_slice %161 {offsets = [0, 32], sizes = [16, 32], strides = [1, 1]} : vector<16x128xf32> to vector<16x32xf32>
      %178 = arith.truncf %177 : vector<16x32xf32> to vector<16x32xbf16>
      %c1_109 = arith.constant 1 : index
      %c0_110 = arith.constant 0 : index
      %c0_111 = arith.constant 0 : index
      %179 = vector.load %arg17[%c1_109, %c0_110, %c0_111] : memref<4x16x32xbf16, #tpu.memory_space<vmem>>, vector<1x16x32xbf16>
      %180 = vector.shape_cast %179 : vector<1x16x32xbf16> to vector<16x32xbf16>
      %181 = vector.shape_cast %178 : vector<16x32xbf16> to vector<1x16x32xbf16>
      tpu.vector_store %arg17[%c1_109, %c0_110, %c0_111], %181 {strides = array<i32>} : memref<4x16x32xbf16, #tpu.memory_space<vmem>>, vector<1x16x32xbf16>,
      %182 = vector.extract_strided_slice %166 {offsets = [0, 32], sizes = [16, 32], strides = [1, 1]} : vector<16x128xf32> to vector<16x32xf32>
      %183 = arith.truncf %182 : vector<16x32xf32> to vector<16x32xbf16>
      %c1_112 = arith.constant 1 : index
      %c0_113 = arith.constant 0 : index
      %c0_114 = arith.constant 0 : index
      %184 = vector.load %arg18[%c1_112, %c0_113, %c0_114] : memref<4x16x32xbf16, #tpu.memory_space<vmem>>, vector<1x16x32xbf16>
      %185 = vector.shape_cast %184 : vector<1x16x32xbf16> to vector<16x32xbf16>
      %186 = vector.shape_cast %183 : vector<16x32xbf16> to vector<1x16x32xbf16>
      tpu.vector_store %arg18[%c1_112, %c0_113, %c0_114], %186 {strides = array<i32>} : memref<4x16x32xbf16, #tpu.memory_space<vmem>>, vector<1x16x32xbf16>,
      %187 = vector.extract_strided_slice %161 {offsets = [0, 64], sizes = [16, 32], strides = [1, 1]} : vector<16x128xf32> to vector<16x32xf32>
      %188 = arith.truncf %187 : vector<16x32xf32> to vector<16x32xbf16>
      %c2_115 = arith.constant 2 : index
      %c0_116 = arith.constant 0 : index
      %c0_117 = arith.constant 0 : index
      %189 = vector.load %arg17[%c2_115, %c0_116, %c0_117] : memref<4x16x32xbf16, #tpu.memory_space<vmem>>, vector<1x16x32xbf16>
      %190 = vector.shape_cast %189 : vector<1x16x32xbf16> to vector<16x32xbf16>
      %191 = vector.shape_cast %188 : vector<16x32xbf16> to vector<1x16x32xbf16>
      tpu.vector_store %arg17[%c2_115, %c0_116, %c0_117], %191 {strides = array<i32>} : memref<4x16x32xbf16, #tpu.memory_space<vmem>>, vector<1x16x32xbf16>,
      %192 = vector.extract_strided_slice %166 {offsets = [0, 64], sizes = [16, 32], strides = [1, 1]} : vector<16x128xf32> to vector<16x32xf32>
      %193 = arith.truncf %192 : vector<16x32xf32> to vector<16x32xbf16>
      %c2_118 = arith.constant 2 : index
      %c0_119 = arith.constant 0 : index
      %c0_120 = arith.constant 0 : index
      %194 = vector.load %arg18[%c2_118, %c0_119, %c0_120] : memref<4x16x32xbf16, #tpu.memory_space<vmem>>, vector<1x16x32xbf16>
      %195 = vector.shape_cast %194 : vector<1x16x32xbf16> to vector<16x32xbf16>
      %196 = vector.shape_cast %193 : vector<16x32xbf16> to vector<1x16x32xbf16>
      tpu.vector_store %arg18[%c2_118, %c0_119, %c0_120], %196 {strides = array<i32>} : memref<4x16x32xbf16, #tpu.memory_space<vmem>>, vector<1x16x32xbf16>,
      %197 = vector.extract_strided_slice %161 {offsets = [0, 96], sizes = [16, 32], strides = [1, 1]} : vector<16x128xf32> to vector<16x32xf32>
      %198 = arith.truncf %197 : vector<16x32xf32> to vector<16x32xbf16>
      %c3_121 = arith.constant 3 : index
      %c0_122 = arith.constant 0 : index
      %c0_123 = arith.constant 0 : index
      %199 = vector.load %arg17[%c3_121, %c0_122, %c0_123] : memref<4x16x32xbf16, #tpu.memory_space<vmem>>, vector<1x16x32xbf16>
      %200 = vector.shape_cast %199 : vector<1x16x32xbf16> to vector<16x32xbf16>
      %201 = vector.shape_cast %198 : vector<16x32xbf16> to vector<1x16x32xbf16>
      tpu.vector_store %arg17[%c3_121, %c0_122, %c0_123], %201 {strides = array<i32>} : memref<4x16x32xbf16, #tpu.memory_space<vmem>>, vector<1x16x32xbf16>,
      %202 = vector.extract_strided_slice %166 {offsets = [0, 96], sizes = [16, 32], strides = [1, 1]} : vector<16x128xf32> to vector<16x32xf32>
      %203 = arith.truncf %202 : vector<16x32xf32> to vector<16x32xbf16>
      %c3_124 = arith.constant 3 : index
      %c0_125 = arith.constant 0 : index
      %c0_126 = arith.constant 0 : index
      %204 = vector.load %arg18[%c3_124, %c0_125, %c0_126] : memref<4x16x32xbf16, #tpu.memory_space<vmem>>, vector<1x16x32xbf16>
      %205 = vector.shape_cast %204 : vector<1x16x32xbf16> to vector<16x32xbf16>
      %206 = vector.shape_cast %203 : vector<16x32xbf16> to vector<1x16x32xbf16>
      tpu.vector_store %arg18[%c3_124, %c0_125, %c0_126], %206 {strides = array<i32>} : memref<4x16x32xbf16, #tpu.memory_space<vmem>>, vector<1x16x32xbf16>,
    } else {
    }
    %c0 = arith.constant 0 : index
    %c0_1 = arith.constant 0 : index
    %c0_2 = arith.constant 0 : index
    %3 = vector.load %arg2[%c0, %c0_1, %c0_2] : memref<1x16x128xf32, #tpu.memory_space<vmem>>, vector<1x16x128xf32>
    %4 = vector.shape_cast %3 : vector<1x16x128xf32> to vector<16x128xf32>
    %5 = arith.truncf %4 : vector<16x128xf32> to vector<16x128xbf16>
    %c0_3 = arith.constant 0 : index
    %c0_4 = arith.constant 0 : index
    %6 = vector.load %arg5[%c0_3, %c0_4] : memref<128x128xbf16, #tpu.memory_space<vmem>>, vector<128x128xbf16>
    %cst = arith.constant dense<0.000000e+00> : vector<16x128xf32>
    %7 = tpu.matmul %5, %6, %cst {dimension_numbers = #tpu.dot_dimension_numbers<[1], [0], [0], [1], [0, 0, 1, 1], [], []>} : vector<16x128xbf16>, vector<128x128xbf16>, vector<16x128xf32> -> vector<16x128xf32>
    %c0_5 = arith.constant 0 : index
    %c0_6 = arith.constant 0 : index
    %8 = vector.load %arg6[%c0_5, %c0_6] : memref<1x128xf32, #tpu.memory_space<vmem>>, vector<1x128xf32>
    %9 = vector.broadcast %8 : vector<1x128xf32> to vector<16x128xf32>
    %10 = arith.addf %7, %9 : vector<16x128xf32>
    %cst_7 = arith.constant 0.176776692 : f32
    %11 = vector.broadcast %cst_7 : f32 to vector<16x128xf32>
    %12 = arith.mulf %10, %11 : vector<16x128xf32>
    %13 = arith.truncf %12 : vector<16x128xf32> to vector<16x128xbf16>
    %c0_8 = arith.constant 0 : index
    %c0_9 = arith.constant 0 : index
    %c0_10 = arith.constant 0 : index
    %14 = vector.load %arg4[%c0_8, %c0_9, %c0_10] : memref<1x16x16xbf16, #tpu.memory_space<vmem>>, vector<1x16x16xbf16>
    %15 = vector.shape_cast %14 : vector<1x16x16xbf16> to vector<16x16xbf16>
    %16 = arith.extf %15 : vector<16x16xbf16> to vector<16x16xf32>
    %cst_11 = arith.constant 1.000000e+00 : f32
    %17 = vector.broadcast %cst_11 : f32 to vector<16x16xf32>
    %18 = arith.subf %16, %17 : vector<16x16xf32>
    %cst_12 = arith.constant 1.000000e+09 : f32
    %19 = vector.broadcast %cst_12 : f32 to vector<16x16xf32>
    %20 = arith.mulf %18, %19 : vector<16x16xf32>
    %21 = vector.extract_strided_slice %13 {offsets = [0, 0], sizes = [16, 32], strides = [1, 1]} : vector<16x128xbf16> to vector<16x32xbf16>
    %c0_13 = arith.constant 0 : index
    %c0_14 = arith.constant 0 : index
    %c0_15 = arith.constant 0 : index
    %22 = vector.load %arg17[%c0_13, %c0_14, %c0_15] : memref<4x16x32xbf16, #tpu.memory_space<vmem>>, vector<1x16x32xbf16>
    %23 = vector.shape_cast %22 : vector<1x16x32xbf16> to vector<16x32xbf16>
    %cst_16 = arith.constant dense<0.000000e+00> : vector<16x16xf32>
    %24 = tpu.matmul %21, %23, %cst_16 {dimension_numbers = #tpu.dot_dimension_numbers<[1], [1], [0], [0], [0, 0, 1, 0], [], []>} : vector<16x32xbf16>, vector<16x32xbf16>, vector<16x16xf32> -> vector<16x16xf32>
    %25 = arith.addf %24, %20 : vector<16x16xf32>
    %cst_17 = arith.constant dense<0xFF800000> : vector<16xf32>
    %26 = vector.multi_reduction <maximumf>, %25, %cst_17 [1] : vector<16x16xf32> to vector<16xf32>
    %27 = vector.shape_cast %26 : vector<16xf32> to vector<16x1xf32>
    %28 = vector.broadcast %27 : vector<16x1xf32> to vector<16x16xf32>
    %29 = arith.subf %25, %28 : vector<16x16xf32>
    %30 = math.exp %29 : vector<16x16xf32>
    %cst_18 = arith.constant dense<0.000000e+00> : vector<16xf32>
    %31 = vector.multi_reduction <add>, %30, %cst_18 [1] : vector<16x16xf32> to vector<16xf32>
    %32 = vector.shape_cast %31 : vector<16xf32> to vector<16x1xf32>
    %33 = tpu.reciprocal %32 {approx = true} : vector<16x1xf32> -> vector<16x1xf32>
    %34 = vector.broadcast %33 : vector<16x1xf32> to vector<16x16xf32>
    %35 = arith.mulf %30, %34 : vector<16x16xf32>
    %36 = arith.truncf %35 : vector<16x16xf32> to vector<16x16xbf16>
    %c0_19 = arith.constant 0 : index
    %c0_20 = arith.constant 0 : index
    %c0_21 = arith.constant 0 : index
    %c0_22 = arith.constant 0 : index
    %37 = vector.load %arg16[%c0_19, %c0_20, %c0_21, %c0_22] : memref<1x4x16x16xbf16, #tpu.memory_space<vmem>>, vector<1x1x16x16xbf16>
    %38 = vector.shape_cast %37 : vector<1x1x16x16xbf16> to vector<16x16xbf16>
    %39 = vector.shape_cast %36 : vector<16x16xbf16> to vector<1x1x16x16xbf16>
    tpu.vector_store %arg16[%c0_19, %c0_20, %c0_21, %c0_22], %39 {strides = array<i32>} : memref<1x4x16x16xbf16, #tpu.memory_space<vmem>>, vector<1x1x16x16xbf16>,
    %40 = arith.truncf %35 : vector<16x16xf32> to vector<16x16xbf16>
    %c0_23 = arith.constant 0 : index
    %c0_24 = arith.constant 0 : index
    %c0_25 = arith.constant 0 : index
    %41 = vector.load %arg18[%c0_23, %c0_24, %c0_25] : memref<4x16x32xbf16, #tpu.memory_space<vmem>>, vector<1x16x32xbf16>
    %42 = vector.shape_cast %41 : vector<1x16x32xbf16> to vector<16x32xbf16>
    %cst_26 = arith.constant dense<0.000000e+00> : vector<16x32xf32>
    %43 = tpu.matmul %40, %42, %cst_26 {dimension_numbers = #tpu.dot_dimension_numbers<[1], [0], [0], [1], [0, 0, 1, 1], [], []>} : vector<16x16xbf16>, vector<16x32xbf16>, vector<16x32xf32> -> vector<16x32xf32>
    %44 = arith.truncf %43 : vector<16x32xf32> to vector<16x32xbf16>
    %c0_27 = arith.constant 0 : index
    %c0_28 = arith.constant 0 : index
    %45 = vector.load %arg19[%c0_27, %c0_28] : memref<16x128xbf16, #tpu.memory_space<vmem>>, vector<16x32xbf16>
    tpu.vector_store %arg19[%c0_27, %c0_28], %44 {strides = array<i32>} : memref<16x128xbf16, #tpu.memory_space<vmem>>, vector<16x32xbf16>,
    %46 = vector.extract_strided_slice %13 {offsets = [0, 32], sizes = [16, 32], strides = [1, 1]} : vector<16x128xbf16> to vector<16x32xbf16>
    %c1 = arith.constant 1 : index
    %c0_29 = arith.constant 0 : index
    %c0_30 = arith.constant 0 : index
    %47 = vector.load %arg17[%c1, %c0_29, %c0_30] : memref<4x16x32xbf16, #tpu.memory_space<vmem>>, vector<1x16x32xbf16>
    %48 = vector.shape_cast %47 : vector<1x16x32xbf16> to vector<16x32xbf16>
    %cst_31 = arith.constant dense<0.000000e+00> : vector<16x16xf32>
    %49 = tpu.matmul %46, %48, %cst_31 {dimension_numbers = #tpu.dot_dimension_numbers<[1], [1], [0], [0], [0, 0, 1, 0], [], []>} : vector<16x32xbf16>, vector<16x32xbf16>, vector<16x16xf32> -> vector<16x16xf32>
    %50 = arith.addf %49, %20 : vector<16x16xf32>
    %cst_32 = arith.constant dense<0xFF800000> : vector<16xf32>
    %51 = vector.multi_reduction <maximumf>, %50, %cst_32 [1] : vector<16x16xf32> to vector<16xf32>
    %52 = vector.shape_cast %51 : vector<16xf32> to vector<16x1xf32>
    %53 = vector.broadcast %52 : vector<16x1xf32> to vector<16x16xf32>
    %54 = arith.subf %50, %53 : vector<16x16xf32>
    %55 = math.exp %54 : vector<16x16xf32>
    %cst_33 = arith.constant dense<0.000000e+00> : vector<16xf32>
    %56 = vector.multi_reduction <add>, %55, %cst_33 [1] : vector<16x16xf32> to vector<16xf32>
    %57 = vector.shape_cast %56 : vector<16xf32> to vector<16x1xf32>
    %58 = tpu.reciprocal %57 {approx = true} : vector<16x1xf32> -> vector<16x1xf32>
    %59 = vector.broadcast %58 : vector<16x1xf32> to vector<16x16xf32>
    %60 = arith.mulf %55, %59 : vector<16x16xf32>
    %61 = arith.truncf %60 : vector<16x16xf32> to vector<16x16xbf16>
    %c0_34 = arith.constant 0 : index
    %c1_35 = arith.constant 1 : index
    %c0_36 = arith.constant 0 : index
    %c0_37 = arith.constant 0 : index
    %62 = vector.load %arg16[%c0_34, %c1_35, %c0_36, %c0_37] : memref<1x4x16x16xbf16, #tpu.memory_space<vmem>>, vector<1x1x16x16xbf16>
    %63 = vector.shape_cast %62 : vector<1x1x16x16xbf16> to vector<16x16xbf16>
    %64 = vector.shape_cast %61 : vector<16x16xbf16> to vector<1x1x16x16xbf16>
    tpu.vector_store %arg16[%c0_34, %c1_35, %c0_36, %c0_37], %64 {strides = array<i32>} : memref<1x4x16x16xbf16, #tpu.memory_space<vmem>>, vector<1x1x16x16xbf16>,
    %65 = arith.truncf %60 : vector<16x16xf32> to vector<16x16xbf16>
    %c1_38 = arith.constant 1 : index
    %c0_39 = arith.constant 0 : index
    %c0_40 = arith.constant 0 : index
    %66 = vector.load %arg18[%c1_38, %c0_39, %c0_40] : memref<4x16x32xbf16, #tpu.memory_space<vmem>>, vector<1x16x32xbf16>
    %67 = vector.shape_cast %66 : vector<1x16x32xbf16> to vector<16x32xbf16>
    %cst_41 = arith.constant dense<0.000000e+00> : vector<16x32xf32>
    %68 = tpu.matmul %65, %67, %cst_41 {dimension_numbers = #tpu.dot_dimension_numbers<[1], [0], [0], [1], [0, 0, 1, 1], [], []>} : vector<16x16xbf16>, vector<16x32xbf16>, vector<16x32xf32> -> vector<16x32xf32>
    %69 = arith.truncf %68 : vector<16x32xf32> to vector<16x32xbf16>
    %c0_42 = arith.constant 0 : index
    %c32 = arith.constant 32 : index
    %70 = vector.load %arg19[%c0_42, %c32] : memref<16x128xbf16, #tpu.memory_space<vmem>>, vector<16x32xbf16>
    tpu.vector_store %arg19[%c0_42, %c32], %69 {strides = array<i32>} : memref<16x128xbf16, #tpu.memory_space<vmem>>, vector<16x32xbf16>,
    %71 = vector.extract_strided_slice %13 {offsets = [0, 64], sizes = [16, 32], strides = [1, 1]} : vector<16x128xbf16> to vector<16x32xbf16>
    %c2 = arith.constant 2 : index
    %c0_43 = arith.constant 0 : index
    %c0_44 = arith.constant 0 : index
    %72 = vector.load %arg17[%c2, %c0_43, %c0_44] : memref<4x16x32xbf16, #tpu.memory_space<vmem>>, vector<1x16x32xbf16>
    %73 = vector.shape_cast %72 : vector<1x16x32xbf16> to vector<16x32xbf16>
    %cst_45 = arith.constant dense<0.000000e+00> : vector<16x16xf32>
    %74 = tpu.matmul %71, %73, %cst_45 {dimension_numbers = #tpu.dot_dimension_numbers<[1], [1], [0], [0], [0, 0, 1, 0], [], []>} : vector<16x32xbf16>, vector<16x32xbf16>, vector<16x16xf32> -> vector<16x16xf32>
    %75 = arith.addf %74, %20 : vector<16x16xf32>
    %cst_46 = arith.constant dense<0xFF800000> : vector<16xf32>
    %76 = vector.multi_reduction <maximumf>, %75, %cst_46 [1] : vector<16x16xf32> to vector<16xf32>
    %77 = vector.shape_cast %76 : vector<16xf32> to vector<16x1xf32>
    %78 = vector.broadcast %77 : vector<16x1xf32> to vector<16x16xf32>
    %79 = arith.subf %75, %78 : vector<16x16xf32>
    %80 = math.exp %79 : vector<16x16xf32>
    %cst_47 = arith.constant dense<0.000000e+00> : vector<16xf32>
    %81 = vector.multi_reduction <add>, %80, %cst_47 [1] : vector<16x16xf32> to vector<16xf32>
    %82 = vector.shape_cast %81 : vector<16xf32> to vector<16x1xf32>
    %83 = tpu.reciprocal %82 {approx = true} : vector<16x1xf32> -> vector<16x1xf32>
    %84 = vector.broadcast %83 : vector<16x1xf32> to vector<16x16xf32>
    %85 = arith.mulf %80, %84 : vector<16x16xf32>
    %86 = arith.truncf %85 : vector<16x16xf32> to vector<16x16xbf16>
    %c0_48 = arith.constant 0 : index
    %c2_49 = arith.constant 2 : index
    %c0_50 = arith.constant 0 : index
    %c0_51 = arith.constant 0 : index
    %87 = vector.load %arg16[%c0_48, %c2_49, %c0_50, %c0_51] : memref<1x4x16x16xbf16, #tpu.memory_space<vmem>>, vector<1x1x16x16xbf16>
    %88 = vector.shape_cast %87 : vector<1x1x16x16xbf16> to vector<16x16xbf16>
    %89 = vector.shape_cast %86 : vector<16x16xbf16> to vector<1x1x16x16xbf16>
    tpu.vector_store %arg16[%c0_48, %c2_49, %c0_50, %c0_51], %89 {strides = array<i32>} : memref<1x4x16x16xbf16, #tpu.memory_space<vmem>>, vector<1x1x16x16xbf16>,
    %90 = arith.truncf %85 : vector<16x16xf32> to vector<16x16xbf16>
    %c2_52 = arith.constant 2 : index
    %c0_53 = arith.constant 0 : index
    %c0_54 = arith.constant 0 : index
    %91 = vector.load %arg18[%c2_52, %c0_53, %c0_54] : memref<4x16x32xbf16, #tpu.memory_space<vmem>>, vector<1x16x32xbf16>
    %92 = vector.shape_cast %91 : vector<1x16x32xbf16> to vector<16x32xbf16>
    %cst_55 = arith.constant dense<0.000000e+00> : vector<16x32xf32>
    %93 = tpu.matmul %90, %92, %cst_55 {dimension_numbers = #tpu.dot_dimension_numbers<[1], [0], [0], [1], [0, 0, 1, 1], [], []>} : vector<16x16xbf16>, vector<16x32xbf16>, vector<16x32xf32> -> vector<16x32xf32>
    %94 = arith.truncf %93 : vector<16x32xf32> to vector<16x32xbf16>
    %c0_56 = arith.constant 0 : index
    %c64 = arith.constant 64 : index
    %95 = vector.load %arg19[%c0_56, %c64] : memref<16x128xbf16, #tpu.memory_space<vmem>>, vector<16x32xbf16>
    tpu.vector_store %arg19[%c0_56, %c64], %94 {strides = array<i32>} : memref<16x128xbf16, #tpu.memory_space<vmem>>, vector<16x32xbf16>,
    %96 = vector.extract_strided_slice %13 {offsets = [0, 96], sizes = [16, 32], strides = [1, 1]} : vector<16x128xbf16> to vector<16x32xbf16>
    %c3 = arith.constant 3 : index
    %c0_57 = arith.constant 0 : index
    %c0_58 = arith.constant 0 : index
    %97 = vector.load %arg17[%c3, %c0_57, %c0_58] : memref<4x16x32xbf16, #tpu.memory_space<vmem>>, vector<1x16x32xbf16>
    %98 = vector.shape_cast %97 : vector<1x16x32xbf16> to vector<16x32xbf16>
    %cst_59 = arith.constant dense<0.000000e+00> : vector<16x16xf32>
    %99 = tpu.matmul %96, %98, %cst_59 {dimension_numbers = #tpu.dot_dimension_numbers<[1], [1], [0], [0], [0, 0, 1, 0], [], []>} : vector<16x32xbf16>, vector<16x32xbf16>, vector<16x16xf32> -> vector<16x16xf32>
    %100 = arith.addf %99, %20 : vector<16x16xf32>
    %cst_60 = arith.constant dense<0xFF800000> : vector<16xf32>
    %101 = vector.multi_reduction <maximumf>, %100, %cst_60 [1] : vector<16x16xf32> to vector<16xf32>
    %102 = vector.shape_cast %101 : vector<16xf32> to vector<16x1xf32>
    %103 = vector.broadcast %102 : vector<16x1xf32> to vector<16x16xf32>
    %104 = arith.subf %100, %103 : vector<16x16xf32>
    %105 = math.exp %104 : vector<16x16xf32>
    %cst_61 = arith.constant dense<0.000000e+00> : vector<16xf32>
    %106 = vector.multi_reduction <add>, %105, %cst_61 [1] : vector<16x16xf32> to vector<16xf32>
    %107 = vector.shape_cast %106 : vector<16xf32> to vector<16x1xf32>
    %108 = tpu.reciprocal %107 {approx = true} : vector<16x1xf32> -> vector<16x1xf32>
    %109 = vector.broadcast %108 : vector<16x1xf32> to vector<16x16xf32>
    %110 = arith.mulf %105, %109 : vector<16x16xf32>
    %111 = arith.truncf %110 : vector<16x16xf32> to vector<16x16xbf16>
    %c0_62 = arith.constant 0 : index
    %c3_63 = arith.constant 3 : index
    %c0_64 = arith.constant 0 : index
    %c0_65 = arith.constant 0 : index
    %112 = vector.load %arg16[%c0_62, %c3_63, %c0_64, %c0_65] : memref<1x4x16x16xbf16, #tpu.memory_space<vmem>>, vector<1x1x16x16xbf16>
    %113 = vector.shape_cast %112 : vector<1x1x16x16xbf16> to vector<16x16xbf16>
    %114 = vector.shape_cast %111 : vector<16x16xbf16> to vector<1x1x16x16xbf16>
    tpu.vector_store %arg16[%c0_62, %c3_63, %c0_64, %c0_65], %114 {strides = array<i32>} : memref<1x4x16x16xbf16, #tpu.memory_space<vmem>>, vector<1x1x16x16xbf16>,
    %115 = arith.truncf %110 : vector<16x16xf32> to vector<16x16xbf16>
    %c3_66 = arith.constant 3 : index
    %c0_67 = arith.constant 0 : index
    %c0_68 = arith.constant 0 : index
    %116 = vector.load %arg18[%c3_66, %c0_67, %c0_68] : memref<4x16x32xbf16, #tpu.memory_space<vmem>>, vector<1x16x32xbf16>
    %117 = vector.shape_cast %116 : vector<1x16x32xbf16> to vector<16x32xbf16>
    %cst_69 = arith.constant dense<0.000000e+00> : vector<16x32xf32>
    %118 = tpu.matmul %115, %117, %cst_69 {dimension_numbers = #tpu.dot_dimension_numbers<[1], [0], [0], [1], [0, 0, 1, 1], [], []>} : vector<16x16xbf16>, vector<16x32xbf16>, vector<16x32xf32> -> vector<16x32xf32>
    %119 = arith.truncf %118 : vector<16x32xf32> to vector<16x32xbf16>
    %c0_70 = arith.constant 0 : index
    %c96 = arith.constant 96 : index
    %120 = vector.load %arg19[%c0_70, %c96] : memref<16x128xbf16, #tpu.memory_space<vmem>>, vector<16x32xbf16>
    tpu.vector_store %arg19[%c0_70, %c96], %119 {strides = array<i32>} : memref<16x128xbf16, #tpu.memory_space<vmem>>, vector<16x32xbf16>,
    %c0_71 = arith.constant 0 : index
    %c0_72 = arith.constant 0 : index
    %121 = vector.load %arg19[%c0_71, %c0_72] : memref<16x128xbf16, #tpu.memory_space<vmem>>, vector<16x128xbf16>
    %c0_73 = arith.constant 0 : index
    %c0_74 = arith.constant 0 : index
    %122 = vector.load %arg11[%c0_73, %c0_74] : memref<128x128xbf16, #tpu.memory_space<vmem>>, vector<128x128xbf16>
    %cst_75 = arith.constant dense<0.000000e+00> : vector<16x128xf32>
    %123 = tpu.matmul %121, %122, %cst_75 {dimension_numbers = #tpu.dot_dimension_numbers<[1], [0], [0], [1], [0, 0, 1, 1], [], []>} : vector<16x128xbf16>, vector<128x128xbf16>, vector<16x128xf32> -> vector<16x128xf32>
    %c0_76 = arith.constant 0 : index
    %c0_77 = arith.constant 0 : index
    %124 = vector.load %arg12[%c0_76, %c0_77] : memref<1x128xf32, #tpu.memory_space<vmem>>, vector<1x128xf32>
    %125 = vector.broadcast %124 : vector<1x128xf32> to vector<16x128xf32>
    %126 = arith.addf %123, %125 : vector<16x128xf32>
    %127 = arith.addf %126, %4 : vector<16x128xf32>
    %cst_78 = arith.constant dense<0.000000e+00> : vector<16xf32>
    %128 = vector.multi_reduction <add>, %127, %cst_78 [1] : vector<16x128xf32> to vector<16xf32>
    %129 = vector.shape_cast %128 : vector<16xf32> to vector<16x1xf32>
    %cst_79 = arith.constant 1.280000e+02 : f32
    %130 = vector.broadcast %cst_79 : f32 to vector<16x1xf32>
    %131 = arith.divf %129, %130 : vector<16x1xf32>
    %132 = vector.broadcast %131 : vector<16x1xf32> to vector<16x128xf32>
    %133 = arith.subf %127, %132 : vector<16x128xf32>
    %134 = arith.mulf %133, %133 : vector<16x128xf32>
    %cst_80 = arith.constant dense<0.000000e+00> : vector<16xf32>
    %135 = vector.multi_reduction <add>, %134, %cst_80 [1] : vector<16x128xf32> to vector<16xf32>
    %136 = vector.shape_cast %135 : vector<16xf32> to vector<16x1xf32>
    %cst_81 = arith.constant 1.280000e+02 : f32
    %137 = vector.broadcast %cst_81 : f32 to vector<16x1xf32>
    %138 = arith.divf %136, %137 : vector<16x1xf32>
    %139 = vector.broadcast %131 : vector<16x1xf32> to vector<16x128xf32>
    %140 = arith.subf %127, %139 : vector<16x128xf32>
    %cst_82 = arith.constant 9.99999974E-6 : f32
    %141 = vector.broadcast %cst_82 : f32 to vector<16x1xf32>
    %142 = arith.addf %138, %141 : vector<16x1xf32>
    %143 = math.rsqrt %142 : vector<16x1xf32>
    %144 = vector.broadcast %143 : vector<16x1xf32> to vector<16x128xf32>
    %145 = arith.mulf %140, %144 : vector<16x128xf32>
    %c0_83 = arith.constant 0 : index
    %c0_84 = arith.constant 0 : index
    %146 = vector.load %arg13[%c0_83, %c0_84] : memref<1x128xf32, #tpu.memory_space<vmem>>, vector<1x128xf32>
    %147 = vector.broadcast %146 : vector<1x128xf32> to vector<16x128xf32>
    %148 = arith.mulf %145, %147 : vector<16x128xf32>
    %c0_85 = arith.constant 0 : index
    %c0_86 = arith.constant 0 : index
    %149 = vector.load %arg14[%c0_85, %c0_86] : memref<1x128xf32, #tpu.memory_space<vmem>>, vector<1x128xf32>
    %150 = vector.broadcast %149 : vector<1x128xf32> to vector<16x128xf32>
    %151 = arith.addf %148, %150 : vector<16x128xf32>
    %c0_87 = arith.constant 0 : index
    %c0_88 = arith.constant 0 : index
    %c0_89 = arith.constant 0 : index
    %152 = vector.load %arg15[%c0_87, %c0_88, %c0_89] : memref<1x16x128xf32, #tpu.memory_space<vmem>>, vector<1x16x128xf32>
    %153 = vector.shape_cast %152 : vector<1x16x128xf32> to vector<16x128xf32>
    %154 = vector.shape_cast %151 : vector<16x128xf32> to vector<1x16x128xf32>
    tpu.vector_store %arg15[%c0_87, %c0_88, %c0_89], %154 {strides = array<i32>} : memref<1x16x128xf32, #tpu.memory_space<vmem>>, vector<1x16x128xf32>,
    return
  }
  func.func @transform_0(%arg0: i32, %arg1: i32) -> (i32, i32, i32) {
    %c0_i32 = arith.constant 0 : i32
    %c0_i32_0 = arith.constant 0 : i32
    return %arg0, %arg1, %c0_i32 : i32, i32, i32
  }
  func.func @transform_1(%arg0: i32, %arg1: i32) -> (i32, i32, i32) {
    %c0_i32 = arith.constant 0 : i32
    %c0_i32_0 = arith.constant 0 : i32
    %c0_i32_1 = arith.constant 0 : i32
    return %arg0, %c0_i32, %c0_i32_0 : i32, i32, i32
  }
  func.func @transform_2(%arg0: i32, %arg1: i32) -> (i32, i32, i32) {
    %c0_i32 = arith.constant 0 : i32
    %c0_i32_0 = arith.constant 0 : i32
    return %arg0, %arg1, %c0_i32 : i32, i32, i32
  }
  func.func @transform_3(%arg0: i32, %arg1: i32) -> (i32, i32) {
    %c0_i32 = arith.constant 0 : i32
    %c0_i32_0 = arith.constant 0 : i32
    %c0_i32_1 = arith.constant 0 : i32
    return %c0_i32, %c0_i32_0 : i32, i32
  }
  func.func @transform_4(%arg0: i32, %arg1: i32) -> (i32, i32) {
    %c0_i32 = arith.constant 0 : i32
    %c0_i32_0 = arith.constant 0 : i32
    %c0_i32_1 = arith.constant 0 : i32
    return %c0_i32, %c0_i32_0 : i32, i32
  }
  func.func @transform_5(%arg0: i32, %arg1: i32) -> (i32, i32) {
    %c0_i32 = arith.constant 0 : i32
    %c0_i32_0 = arith.constant 0 : i32
    %c0_i32_1 = arith.constant 0 : i32
    return %c0_i32, %c0_i32_0 : i32, i32
  }
  func.func @transform_6(%arg0: i32, %arg1: i32) -> (i32, i32) {
    %c0_i32 = arith.constant 0 : i32
    %c0_i32_0 = arith.constant 0 : i32
    %c0_i32_1 = arith.constant 0 : i32
    return %c0_i32, %c0_i32_0 : i32, i32
  }
  func.func @transform_7(%arg0: i32, %arg1: i32) -> (i32, i32) {
    %c0_i32 = arith.constant 0 : i32
    %c0_i32_0 = arith.constant 0 : i32
    %c0_i32_1 = arith.constant 0 : i32
    return %c0_i32, %c0_i32_0 : i32, i32
  }
  func.func @transform_8(%arg0: i32, %arg1: i32) -> (i32, i32) {
    %c0_i32 = arith.constant 0 : i32
    %c0_i32_0 = arith.constant 0 : i32
    %c0_i32_1 = arith.constant 0 : i32
    return %c0_i32, %c0_i32_0 : i32, i32
  }
  func.func @transform_9(%arg0: i32, %arg1: i32) -> (i32, i32) {
    %c0_i32 = arith.constant 0 : i32
    %c0_i32_0 = arith.constant 0 : i32
    %c0_i32_1 = arith.constant 0 : i32
    return %c0_i32, %c0_i32_0 : i32, i32
  }
  func.func @transform_10(%arg0: i32, %arg1: i32) -> (i32, i32) {
    %c0_i32 = arith.constant 0 : i32
    %c0_i32_0 = arith.constant 0 : i32
    %c0_i32_1 = arith.constant 0 : i32
    return %c0_i32, %c0_i32_0 : i32, i32
  }
  func.func @transform_11(%arg0: i32, %arg1: i32) -> (i32, i32) {
    %c0_i32 = arith.constant 0 : i32
    %c0_i32_0 = arith.constant 0 : i32
    %c0_i32_1 = arith.constant 0 : i32
    return %c0_i32, %c0_i32_0 : i32, i32
  }
  func.func @transform_12(%arg0: i32, %arg1: i32) -> (i32, i32) {
    %c0_i32 = arith.constant 0 : i32
    %c0_i32_0 = arith.constant 0 : i32
    %c0_i32_1 = arith.constant 0 : i32
    return %c0_i32, %c0_i32_0 : i32, i32
  }
  func.func @transform_13(%arg0: i32, %arg1: i32) -> (i32, i32, i32) {
    %c0_i32 = arith.constant 0 : i32
    %c0_i32_0 = arith.constant 0 : i32
    return %arg0, %arg1, %c0_i32 : i32, i32, i32
  }
  func.func @transform_14(%arg0: i32, %arg1: i32) -> (i32, i32, i32, i32) {
    %c0_i32 = arith.constant 0 : i32
    %c0_i32_0 = arith.constant 0 : i32
    %c0_i32_1 = arith.constant 0 : i32
    return %arg0, %c0_i32, %arg1, %c0_i32_0 : i32, i32, i32, i32
  }
}

</mosaic_0001>

<llo_original>
// kernel: tpu_custom_call.1
$region0: #{tpu_custom_call.1}
  #allocation0 [shape = 'u32[]', space=smem, size = 0x4, offset = 0x4, fixed_abs, tag = 'smem constant byte address 0x4 - core index']
  #allocation1 [shape = 'u32[144,128]{1,0:T(1,128)}', space=vmem, size = 0x12000, scoped, tag = 'internal scratch']
  #allocation2 [shape = 'bf16[4,16,32]{2,1,0:T(8,128)(2,1)}', space=vmem, size = 0x4000, scoped, tag = 'scratch operand']
  #allocation3 [shape = 'bf16[4,16,32]{2,1,0:T(8,128)(2,1)}', space=vmem, size = 0x4000, scoped, tag = 'scratch operand']
  #allocation4 [shape = 'bf16[16,128]{1,0:T(8,128)(2,1)}', space=vmem, size = 0x1000, scoped, tag = 'scratch operand']
  %s0 = inlined_call_operand.hbm [shape: f32[2,16,128], index: 0, kind: input, shape index: {}]
  %s1 = inlined_call_operand.hbm [shape: bf16[2,16,128], index: 1, kind: input, shape index: {}]
  %s2 = inlined_call_operand.hbm [shape: bf16[2,16,16], index: 2, kind: input, shape index: {}]
  %s3 = inlined_call_operand.hbm [shape: bf16[128,128], index: 3, kind: input, shape index: {}]
  %s4 = inlined_call_operand.vmem [shape: f32[1,128], index: 4, kind: input, shape index: {}]
  %s5 = inlined_call_operand.hbm [shape: bf16[128,128], index: 5, kind: input, shape index: {}]
  %s6 = inlined_call_operand.vmem [shape: f32[1,128], index: 6, kind: input, shape index: {}]
  %s7 = inlined_call_operand.hbm [shape: bf16[128,128], index: 7, kind: input, shape index: {}]
  %s8 = inlined_call_operand.vmem [shape: f32[1,128], index: 8, kind: input, shape index: {}]
  %s9 = inlined_call_operand.hbm [shape: bf16[128,128], index: 9, kind: input, shape index: {}]
  %s10 = inlined_call_operand.vmem [shape: f32[1,128], index: 10, kind: input, shape index: {}]
  %s11 = inlined_call_operand.vmem [shape: f32[1,128], index: 11, kind: input, shape index: {}]
  %s12 = inlined_call_operand.vmem [shape: f32[1,128], index: 12, kind: input, shape index: {}]
  %s13 = inlined_call_operand.hbm [shape: f32[2,16,128], index: 13, kind: output, shape index: {0}]
  %s14 = inlined_call_operand.hbm [shape: bf16[2,4,16,16], index: 14, kind: output, shape index: {1}]
  %15 = xla_tuple %s13, %s14
  %s16 = sld [smem:[#allocation0]]
  $region125: #{tpu_custom_call.1} parent=0
    _
  %s18 = ssub.s32 1, %s16
  %s19 = scalar_select 0, %s18, %s16
  $region1: #{tpu_custom_call.1} parent=0
    #allocation5 [shape = 'u8[16384]{0}', space=vmem, size = 0x4000, scoped, tag = 'input window, operand 0']
    #allocation6 [shape = 's32[2]{0}', space=sflag, size = 0x8, scoped, tag = 'scoped memory for tpu_custom_call.1']
    #allocation7 [shape = 's32[2]{0}', space=sflag, size = 0x8, scoped, tag = 'scoped memory for tpu_custom_call.1']
    #allocation8 [shape = 'u8[8192]{0}', space=vmem, size = 0x2000, scoped, tag = 'input window, operand 1']
    #allocation9 [shape = 's32[2]{0}', space=sflag, size = 0x8, scoped, tag = 'scoped memory for tpu_custom_call.1']
    #allocation10 [shape = 'u8[8192]{0}', space=vmem, size = 0x2000, scoped, tag = 'input window, operand 2']
    #allocation11 [shape = 'u8[32768]{0}', space=vmem, size = 0x8000, scoped, tag = 'input window, operand 3, single buffered']
    #allocation12 [shape = 's32[1]{0}', space=sflag, size = 0x4, scoped, tag = 'scoped memory for tpu_custom_call.1']
    #allocation13 [shape = 'u8[32768]{0}', space=vmem, size = 0x8000, scoped, tag = 'input window, operand 5, single buffered']
    #allocation14 [shape = 'u8[32768]{0}', space=vmem, size = 0x8000, scoped, tag = 'input window, operand 7, single buffered']
    #allocation15 [shape = 's32[1]{0}', space=sflag, size = 0x4, scoped, tag = 'scoped memory for tpu_custom_call.1']
    #allocation16 [shape = 'u8[32768]{0}', space=vmem, size = 0x8000, scoped, tag = 'input window, operand 9, single buffered']
    #allocation17 [shape = 'u8[16384]{0}', space=vmem, size = 0x4000, scoped, tag = 'output window, operand 0']
    #allocation18 [shape = 'u8[32768]{0}', space=vmem, size = 0x8000, scoped, tag = 'output window, operand 1']
    #allocation19 [shape = 's32[2]{0}', space=sflag, size = 0x8, scoped, tag = 'scoped memory for tpu_custom_call.1']
    %20 = vsyncpa [#allocation6], 0
    %s21 = scalar_lea.sflag [#allocation6], 1
    %22 = vsyncpa %s21, 0
    %23 = vsyncpa [#allocation9], 0
    %s24 = scalar_lea.sflag [#allocation9], 1
    %25 = vsyncpa %s24, 0
    %26 = vsyncpa [#allocation12], 0
    %27 = vsyncpa [#allocation15], 0
    %28 = vsyncpa [#allocation7], 0
    %s29 = scalar_lea.sflag [#allocation7], 1
    %30 = vsyncpa %s29, 0
    %31 = vsyncpa [#allocation19], 0
    %s32 = scalar_lea.sflag [#allocation19], 1
    %33 = vsyncpa %s32, 0
    loop: start=0, step=1, limit=4
    $region2: #{tpu_custom_call.1} parent=1 // loop_pre_header
      _
    $region3: #{tpu_custom_call.1} parent=1 // loop_header
      %s35 = sphi 0, %s39
      %p36 = scmp.ge.s32.totalorder %s35, 4
      %s42 = sphi 0, %s54
      %s43 = sphi 0, %s50
      %s44 = sphi 0, %s42
      %s45 = sphi 0, %s43
      %s46 = sphi 0, %s44
      %s47 = sphi 0, %s45
      %s59 = sphi 0, %s61
      %s62 = sphi 0, %s59
      %s63 = sphi 0, %s62
      %s79 = sphi 0, %s63
      %s85 = sphi 0, %s87
      %s88 = sphi 0, %s85
      %s89 = sphi 0, %s88
      %s105 = sphi 0, %s89
      %s113 = sphi 0, %s115
      %s116 = sphi 0, %s113
      %s117 = sphi 0, %s116
      %s133 = sphi 0, %s117
      %s137 = sphi 0, %s137
      %s139 = sphi 0, %s137
      %s140 = sphi 0, %s139
      %s154 = sphi 0, %s140
      %s158 = sphi 0, %s158
      %s160 = sphi 0, %s158
      %s161 = sphi 0, %s160
      %s175 = sphi 0, %s161
      %s179 = sphi 0, %s179
      %s181 = sphi 0, %s179
      %s182 = sphi 0, %s181
      %s196 = sphi 0, %s182
      %s200 = sphi 0, %s200
      %s202 = sphi 0, %s200
      %s203 = sphi 0, %s202
      %s217 = sphi 0, %s203
      %s221 = sphi 0, %s221
      %s223 = sphi 0, %s221
      %s224 = sphi 0, %s223
      %s238 = sphi 0, %s224
      %s242 = sphi 0, %s242
      %s244 = sphi 0, %s242
      %s245 = sphi 0, %s244
      %s259 = sphi 0, %s245
      %s263 = sphi 0, %s263
      %s265 = sphi 0, %s263
      %s266 = sphi 0, %s265
      %s280 = sphi 0, %s266
      %s284 = sphi 0, %s284
      %s286 = sphi 0, %s284
      %s287 = sphi 0, %s286
      %s301 = sphi 0, %s287
      %s305 = sphi 0, %s305
      %s307 = sphi 0, %s305
      %s308 = sphi 0, %s307
      %s322 = sphi 0, %s308
      %s326 = sphi 0, %s326
      %s328 = sphi 0, %s326
      %s329 = sphi 0, %s328
      %s343 = sphi 0, %s329
      %s351 = sphi 0, %s353
      %s354 = sphi 0, %s351
      %s355 = sphi 0, %s354
      %s371 = sphi 0, %s355
      %s379 = sphi 0, %s381
      %s382 = sphi 0, %s379
      %s383 = sphi 0, %s382
      %s399 = sphi 0, %s383
    $region4: #{tpu_custom_call.1} parent=1 // loop_header_branch
      %38 = sbr.rel (%p36) target = $region8
    $region5: #{tpu_custom_call.1} parent=1 // loop_body
      %s40 = ssub.s32 %s35, 1
      %s41 = ssub.s32 %s35, 2
      %s48 = sadd.s32 1, %s43
      %p49 = scmp.ge.s32.totalorder %s48, 1
      %s50 = scalar_select %p49, 0, %s48
      %s51 = sadd.s32 1, %s42
      %s52 = scalar_select %p49, %s51, %s42
      %p53 = scmp.ge.s32.totalorder %s52, 2
      %s54 = scalar_select %p53, 0, %s52
      %s55 = ssub.s32 %s42, %s54
      %s56 = ssub.s32 %s43, %s50
      %s57 = sor.u32 %s55, %s56
      %p58 = scmp.eq.s32.totalorder %s57, 0
      %s60 = sadd.s32 %s59, 1
      %s61 = scalar_select %p58, %s59, %s60
      %p64 = pneg %p58
      %p65 = scmp.eq.s32.totalorder %s35, 1
      %p66 = por %p64, %p65
      %p67 = scmp.ne.s32.totalorder %s59, %s62
      %p68 = scmp.eq.s32.totalorder %s35, 0
      %p69 = por %p67, %p68
      %p70 = scmp.ne.s32.totalorder %s59, %s62
      %p71 = scmp.eq.s32.totalorder %s40, 1
      %p72 = por %p70, %p71
      %p73 = scmp.ne.s32.totalorder %s62, %s63
      %p74 = scmp.eq.s32.totalorder %s40, 0
      %p75 = por %p73, %p74
      %p76 = scmp.ne.s32.totalorder %s62, %s63
      %p77 = scmp.eq.s32.totalorder %s41, 1
      %p78 = por %p76, %p77
      %p80 = scmp.ne.s32.totalorder %s63, %s79
      %p81 = scmp.eq.s32.totalorder %s41, 0
      %p82 = por %p80, %p81
      %s83 = ssub.s32 %s42, %s54
      %p84 = scmp.eq.s32.totalorder %s83, 0
      %s86 = sadd.s32 %s85, 1
      %s87 = scalar_select %p84, %s85, %s86
      %p90 = pneg %p84
      %p91 = scmp.eq.s32.totalorder %s35, 1
      %p92 = por %p90, %p91
      %p93 = scmp.ne.s32.totalorder %s85, %s88
      %p94 = scmp.eq.s32.totalorder %s35, 0
      %p95 = por %p93, %p94
      %p96 = scmp.ne.s32.totalorder %s85, %s88
      %p97 = scmp.eq.s32.totalorder %s40, 1
      %p98 = por %p96, %p97
      %p99 = scmp.ne.s32.totalorder %s88, %s89
      %p100 = scmp.eq.s32.totalorder %s40, 0
      %p101 = por %p99, %p100
      %p102 = scmp.ne.s32.totalorder %s88, %s89
      %p103 = scmp.eq.s32.totalorder %s41, 1
      %p104 = por %p102, %p103
      %p106 = scmp.ne.s32.totalorder %s89, %s105
      %p107 = scmp.eq.s32.totalorder %s41, 0
      %p108 = por %p106, %p107
      %s109 = ssub.s32 %s42, %s54
      %s110 = ssub.s32 %s43, %s50
      %s111 = sor.u32 %s109, %s110
      %p112 = scmp.eq.s32.totalorder %s111, 0
      %s114 = sadd.s32 %s113, 1
      %s115 = scalar_select %p112, %s113, %s114
      %p118 = pneg %p112
      %p119 = scmp.eq.s32.totalorder %s35, 1
      %p120 = por %p118, %p119
      %p121 = scmp.ne.s32.totalorder %s113, %s116
      %p122 = scmp.eq.s32.totalorder %s35, 0
      %p123 = por %p121, %p122
      %p124 = scmp.ne.s32.totalorder %s113, %s116
      %p125 = scmp.eq.s32.totalorder %s40, 1
      %p126 = por %p124, %p125
      %p127 = scmp.ne.s32.totalorder %s116, %s117
      %p128 = scmp.eq.s32.totalorder %s40, 0
      %p129 = por %p127, %p128
      %p130 = scmp.ne.s32.totalorder %s116, %s117
      %p131 = scmp.eq.s32.totalorder %s41, 1
      %p132 = por %p130, %p131
      %p134 = scmp.ne.s32.totalorder %s117, %s133
      %p135 = scmp.eq.s32.totalorder %s41, 0
      %p136 = por %p134, %p135
      %s138 = sadd.s32 %s137, 1
      %p141 = scmp.eq.s32.totalorder %s35, 1
      %p142 = scmp.ne.s32.totalorder %s137, %s139
      %p143 = scmp.eq.s32.totalorder %s35, 0
      %p144 = por %p142, %p143
      %p145 = scmp.ne.s32.totalorder %s137, %s139
      %p146 = scmp.eq.s32.totalorder %s40, 1
      %p147 = por %p145, %p146
      %p148 = scmp.ne.s32.totalorder %s139, %s140
      %p149 = scmp.eq.s32.totalorder %s40, 0
      %p150 = por %p148, %p149
      %p151 = scmp.ne.s32.totalorder %s139, %s140
      %p152 = scmp.eq.s32.totalorder %s41, 1
      %p153 = por %p151, %p152
      %p155 = scmp.ne.s32.totalorder %s140, %s154
      %p156 = scmp.eq.s32.totalorder %s41, 0
      %p157 = por %p155, %p156
      %s159 = sadd.s32 %s158, 1
      %p162 = scmp.eq.s32.totalorder %s35, 1
      %p163 = scmp.ne.s32.totalorder %s158, %s160
      %p164 = scmp.eq.s32.totalorder %s35, 0
      %p165 = por %p163, %p164
      %p166 = scmp.ne.s32.totalorder %s158, %s160
      %p167 = scmp.eq.s32.totalorder %s40, 1
      %p168 = por %p166, %p167
      %p169 = scmp.ne.s32.totalorder %s160, %s161
      %p170 = scmp.eq.s32.totalorder %s40, 0
      %p171 = por %p169, %p170
      %p172 = scmp.ne.s32.totalorder %s160, %s161
      %p173 = scmp.eq.s32.totalorder %s41, 1
      %p174 = por %p172, %p173
      %p176 = scmp.ne.s32.totalorder %s161, %s175
      %p177 = scmp.eq.s32.totalorder %s41, 0
      %p178 = por %p176, %p177
      %s180 = sadd.s32 %s179, 1
      %p183 = scmp.eq.s32.totalorder %s35, 1
      %p184 = scmp.ne.s32.totalorder %s179, %s181
      %p185 = scmp.eq.s32.totalorder %s35, 0
      %p186 = por %p184, %p185
      %p187 = scmp.ne.s32.totalorder %s179, %s181
      %p188 = scmp.eq.s32.totalorder %s40, 1
      %p189 = por %p187, %p188
      %p190 = scmp.ne.s32.totalorder %s181, %s182
      %p191 = scmp.eq.s32.totalorder %s40, 0
      %p192 = por %p190, %p191
      %p193 = scmp.ne.s32.totalorder %s181, %s182
      %p194 = scmp.eq.s32.totalorder %s41, 1
      %p195 = por %p193, %p194
      %p197 = scmp.ne.s32.totalorder %s182, %s196
      %p198 = scmp.eq.s32.totalorder %s41, 0
      %p199 = por %p197, %p198
      %s201 = sadd.s32 %s200, 1
      %p204 = scmp.eq.s32.totalorder %s35, 1
      %p205 = scmp.ne.s32.totalorder %s200, %s202
      %p206 = scmp.eq.s32.totalorder %s35, 0
      %p207 = por %p205, %p206
      %p208 = scmp.ne.s32.totalorder %s200, %s202
      %p209 = scmp.eq.s32.totalorder %s40, 1
      %p210 = por %p208, %p209
      %p211 = scmp.ne.s32.totalorder %s202, %s203
      %p212 = scmp.eq.s32.totalorder %s40, 0
      %p213 = por %p211, %p212
      %p214 = scmp.ne.s32.totalorder %s202, %s203
      %p215 = scmp.eq.s32.totalorder %s41, 1
      %p216 = por %p214, %p215
      %p218 = scmp.ne.s32.totalorder %s203, %s217
      %p219 = scmp.eq.s32.totalorder %s41, 0
      %p220 = por %p218, %p219
      %s222 = sadd.s32 %s221, 1
      %p225 = scmp.eq.s32.totalorder %s35, 1
      %p226 = scmp.ne.s32.totalorder %s221, %s223
      %p227 = scmp.eq.s32.totalorder %s35, 0
      %p228 = por %p226, %p227
      %p229 = scmp.ne.s32.totalorder %s221, %s223
      %p230 = scmp.eq.s32.totalorder %s40, 1
      %p231 = por %p229, %p230
      %p232 = scmp.ne.s32.totalorder %s223, %s224
      %p233 = scmp.eq.s32.totalorder %s40, 0
      %p234 = por %p232, %p233
      %p235 = scmp.ne.s32.totalorder %s223, %s224
      %p236 = scmp.eq.s32.totalorder %s41, 1
      %p237 = por %p235, %p236
      %p239 = scmp.ne.s32.totalorder %s224, %s238
      %p240 = scmp.eq.s32.totalorder %s41, 0
      %p241 = por %p239, %p240
      %s243 = sadd.s32 %s242, 1
      %p246 = scmp.eq.s32.totalorder %s35, 1
      %p247 = scmp.ne.s32.totalorder %s242, %s244
      %p248 = scmp.eq.s32.totalorder %s35, 0
      %p249 = por %p247, %p248
      %p250 = scmp.ne.s32.totalorder %s242, %s244
      %p251 = scmp.eq.s32.totalorder %s40, 1
      %p252 = por %p250, %p251
      %p253 = scmp.ne.s32.totalorder %s244, %s245
      %p254 = scmp.eq.s32.totalorder %s40, 0
      %p255 = por %p253, %p254
      %p256 = scmp.ne.s32.totalorder %s244, %s245
      %p257 = scmp.eq.s32.totalorder %s41, 1
      %p258 = por %p256, %p257
      %p260 = scmp.ne.s32.totalorder %s245, %s259
      %p261 = scmp.eq.s32.totalorder %s41, 0
      %p262 = por %p260, %p261
      %s264 = sadd.s32 %s263, 1
      %p267 = scmp.eq.s32.totalorder %s35, 1
      %p268 = scmp.ne.s32.totalorder %s263, %s265
      %p269 = scmp.eq.s32.totalorder %s35, 0
      %p270 = por %p268, %p269
      %p271 = scmp.ne.s32.totalorder %s263, %s265
      %p272 = scmp.eq.s32.totalorder %s40, 1
      %p273 = por %p271, %p272
      %p274 = scmp.ne.s32.totalorder %s265, %s266
      %p275 = scmp.eq.s32.totalorder %s40, 0
      %p276 = por %p274, %p275
      %p277 = scmp.ne.s32.totalorder %s265, %s266
      %p278 = scmp.eq.s32.totalorder %s41, 1
      %p279 = por %p277, %p278
      %p281 = scmp.ne.s32.totalorder %s266, %s280
      %p282 = scmp.eq.s32.totalorder %s41, 0
      %p283 = por %p281, %p282
      %s285 = sadd.s32 %s284, 1
      %p288 = scmp.eq.s32.totalorder %s35, 1
      %p289 = scmp.ne.s32.totalorder %s284, %s286
      %p290 = scmp.eq.s32.totalorder %s35, 0
      %p291 = por %p289, %p290
      %p292 = scmp.ne.s32.totalorder %s284, %s286
      %p293 = scmp.eq.s32.totalorder %s40, 1
      %p294 = por %p292, %p293
      %p295 = scmp.ne.s32.totalorder %s286, %s287
      %p296 = scmp.eq.s32.totalorder %s40, 0
      %p297 = por %p295, %p296
      %p298 = scmp.ne.s32.totalorder %s286, %s287
      %p299 = scmp.eq.s32.totalorder %s41, 1
      %p300 = por %p298, %p299
      %p302 = scmp.ne.s32.totalorder %s287, %s301
      %p303 = scmp.eq.s32.totalorder %s41, 0
      %p304 = por %p302, %p303
      %s306 = sadd.s32 %s305, 1
      %p309 = scmp.eq.s32.totalorder %s35, 1
      %p310 = scmp.ne.s32.totalorder %s305, %s307
      %p311 = scmp.eq.s32.totalorder %s35, 0
      %p312 = por %p310, %p311
      %p313 = scmp.ne.s32.totalorder %s305, %s307
      %p314 = scmp.eq.s32.totalorder %s40, 1
      %p315 = por %p313, %p314
      %p316 = scmp.ne.s32.totalorder %s307, %s308
      %p317 = scmp.eq.s32.totalorder %s40, 0
      %p318 = por %p316, %p317
      %p319 = scmp.ne.s32.totalorder %s307, %s308
      %p320 = scmp.eq.s32.totalorder %s41, 1
      %p321 = por %p319, %p320
      %p323 = scmp.ne.s32.totalorder %s308, %s322
      %p324 = scmp.eq.s32.totalorder %s41, 0
      %p325 = por %p323, %p324
      %s327 = sadd.s32 %s326, 1
      %p330 = scmp.eq.s32.totalorder %s35, 1
      %p331 = scmp.ne.s32.totalorder %s326, %s328
      %p332 = scmp.eq.s32.totalorder %s35, 0
      %p333 = por %p331, %p332
      %p334 = scmp.ne.s32.totalorder %s326, %s328
      %p335 = scmp.eq.s32.totalorder %s40, 1
      %p336 = por %p334, %p335
      %p337 = scmp.ne.s32.totalorder %s328, %s329
      %p338 = scmp.eq.s32.totalorder %s40, 0
      %p339 = por %p337, %p338
      %p340 = scmp.ne.s32.totalorder %s328, %s329
      %p341 = scmp.eq.s32.totalorder %s41, 1
      %p342 = por %p340, %p341
      %p344 = scmp.ne.s32.totalorder %s329, %s343
      %p345 = scmp.eq.s32.totalorder %s41, 0
      %p346 = por %p344, %p345
      %s347 = ssub.s32 %s42, %s54
      %s348 = ssub.s32 %s43, %s50
      %s349 = sor.u32 %s347, %s348
      %p350 = scmp.eq.s32.totalorder %s349, 0
      %s352 = sadd.s32 %s351, 1
      %s353 = scalar_select %p350, %s351, %s352
      %p356 = pneg %p350
      %p357 = scmp.eq.s32.totalorder %s35, 1
      %p358 = por %p356, %p357
      %p359 = scmp.ne.s32.totalorder %s351, %s354
      %p360 = scmp.eq.s32.totalorder %s35, 0
      %p361 = por %p359, %p360
      %p362 = scmp.ne.s32.totalorder %s351, %s354
      %p363 = scmp.eq.s32.totalorder %s40, 1
      %p364 = por %p362, %p363
      %p365 = scmp.ne.s32.totalorder %s354, %s355
      %p366 = scmp.eq.s32.totalorder %s40, 0
      %p367 = por %p365, %p366
      %p368 = scmp.ne.s32.totalorder %s354, %s355
      %p369 = scmp.eq.s32.totalorder %s41, 1
      %p370 = por %p368, %p369
      %p372 = scmp.ne.s32.totalorder %s355, %s371
      %p373 = scmp.eq.s32.totalorder %s41, 0
      %p374 = por %p372, %p373
      %s375 = ssub.s32 %s42, %s54
      %s376 = ssub.s32 %s43, %s50
      %s377 = sor.u32 %s375, %s376
      %p378 = scmp.eq.s32.totalorder %s377, 0
      %s380 = sadd.s32 %s379, 1
      %s381 = scalar_select %p378, %s379, %s380
      %p384 = pneg %p378
      %p385 = scmp.eq.s32.totalorder %s35, 1
      %p386 = por %p384, %p385
      %p387 = scmp.ne.s32.totalorder %s379, %s382
      %p388 = scmp.eq.s32.totalorder %s35, 0
      %p389 = por %p387, %p388
      %p390 = scmp.ne.s32.totalorder %s379, %s382
      %p391 = scmp.eq.s32.totalorder %s40, 1
      %p392 = por %p390, %p391
      %p393 = scmp.ne.s32.totalorder %s382, %s383
      %p394 = scmp.eq.s32.totalorder %s40, 0
      %p395 = por %p393, %p394
      %p396 = scmp.ne.s32.totalorder %s382, %s383
      %p397 = scmp.eq.s32.totalorder %s41, 1
      %p398 = por %p396, %p397
      %p400 = scmp.ne.s32.totalorder %s383, %s399
      %p401 = scmp.eq.s32.totalorder %s41, 0
      %p402 = por %p400, %p401
      %p403 = scmp.le.s32.totalorder 1, %s35
      %p404 = scmp.lt.s32.totalorder %s35, 3
      %p405 = pnand %p403, %p404
      %p406 = pneg %p405
      // Predicated region
      $region9: #{tpu_custom_call.1} parent=5 // pred_check
        _
      $region10: #{tpu_custom_call.1} parent=5 // pred_check_branch
        %408 = sbr.rel (%p405) target = $region12
      $region11: #{tpu_custom_call.1} parent=5 // pred_region
        %s409 = ssub.s32 %s35, 1
        // Predicated region
        $region13: #{tpu_custom_call.1} parent=11 // pred_check
          %p410 = pneg %p150
        $region14: #{tpu_custom_call.1} parent=11 // pred_check_branch
          %412 = sbr.rel (%p410) target = $region16
        $region15: #{tpu_custom_call.1} parent=11 // pred_region
          %s414 = ssub.s32 1024, 1024
          %415 = vsyncadd [#allocation12], %s414
          %s416 = sshll.u32 [#allocation11], 4
          %s417 = int_to_ptr.vmem [resolvable:$true] %s416
          %422 = dma.hbm_to_vmem [thread:$0]  %s3, 1024, %s417, [#allocation12], 64, 64, 4
        $region16: #{tpu_custom_call.1} parent=11 // pred_fallthru
          _
        // Predicated region
        $region17: #{tpu_custom_call.1} parent=11 // pred_check
          %p423 = pneg %p171
        $region18: #{tpu_custom_call.1} parent=11 // pred_check_branch
          %425 = sbr.rel (%p423) target = $region20
        $region19: #{tpu_custom_call.1} parent=11 // pred_region
          _
        $region20: #{tpu_custom_call.1} parent=11 // pred_fallthru
          _
        // Predicated region
        $region21: #{tpu_custom_call.1} parent=11 // pred_check
          %p426 = pneg %p192
        $region22: #{tpu_custom_call.1} parent=11 // pred_check_branch
          %428 = sbr.rel (%p426) target = $region24
        $region23: #{tpu_custom_call.1} parent=11 // pred_region
          %s430 = ssub.s32 1024, 1024
          %431 = vsyncadd [#allocation12], %s430
          %s432 = sshll.u32 [#allocation13], 4
          %s433 = int_to_ptr.vmem [resolvable:$true] %s432
          %438 = dma.hbm_to_vmem [thread:$0]  %s5, 1024, %s433, [#allocation12], 64, 64, 4
        $region24: #{tpu_custom_call.1} parent=11 // pred_fallthru
          _
        // Predicated region
        $region25: #{tpu_custom_call.1} parent=11 // pred_check
          %p439 = pneg %p213
        $region26: #{tpu_custom_call.1} parent=11 // pred_check_branch
          %441 = sbr.rel (%p439) target = $region28
        $region27: #{tpu_custom_call.1} parent=11 // pred_region
          _
        $region28: #{tpu_custom_call.1} parent=11 // pred_fallthru
          _
        // Predicated region
        $region29: #{tpu_custom_call.1} parent=11 // pred_check
          %p442 = pneg %p234
        $region30: #{tpu_custom_call.1} parent=11 // pred_check_branch
          %444 = sbr.rel (%p442) target = $region32
        $region31: #{tpu_custom_call.1} parent=11 // pred_region
          %s446 = ssub.s32 1024, 1024
          %447 = vsyncadd [#allocation15], %s446
          %s448 = sshll.u32 [#allocation14], 4
          %s449 = int_to_ptr.vmem [resolvable:$true] %s448
          %454 = dma.hbm_to_vmem [thread:$0]  %s7, 1024, %s449, [#allocation15], 64, 64, 4
        $region32: #{tpu_custom_call.1} parent=11 // pred_fallthru
          _
        // Predicated region
        $region33: #{tpu_custom_call.1} parent=11 // pred_check
          %p455 = pneg %p255
        $region34: #{tpu_custom_call.1} parent=11 // pred_check_branch
          %457 = sbr.rel (%p455) target = $region36
        $region35: #{tpu_custom_call.1} parent=11 // pred_region
          _
        $region36: #{tpu_custom_call.1} parent=11 // pred_fallthru
          _
        // Predicated region
        $region37: #{tpu_custom_call.1} parent=11 // pred_check
          %p458 = pneg %p276
        $region38: #{tpu_custom_call.1} parent=11 // pred_check_branch
          %460 = sbr.rel (%p458) target = $region40
        $region39: #{tpu_custom_call.1} parent=11 // pred_region
          %s462 = ssub.s32 1024, 1024
          %463 = vsyncadd [#allocation15], %s462
          %s464 = sshll.u32 [#allocation16], 4
          %s465 = int_to_ptr.vmem [resolvable:$true] %s464
          %470 = dma.hbm_to_vmem [thread:$0]  %s9, 1024, %s465, [#allocation15], 64, 64, 4
        $region40: #{tpu_custom_call.1} parent=11 // pred_fallthru
          _
        // Predicated region
        $region41: #{tpu_custom_call.1} parent=11 // pred_check
          %p471 = pneg %p297
        $region42: #{tpu_custom_call.1} parent=11 // pred_check_branch
          %473 = sbr.rel (%p471) target = $region44
        $region43: #{tpu_custom_call.1} parent=11 // pred_region
          _
        $region44: #{tpu_custom_call.1} parent=11 // pred_fallthru
          _
        // Predicated region
        $region45: #{tpu_custom_call.1} parent=11 // pred_check
          %p474 = pneg %p318
        $region46: #{tpu_custom_call.1} parent=11 // pred_check_branch
          %476 = sbr.rel (%p474) target = $region48
        $region47: #{tpu_custom_call.1} parent=11 // pred_region
          _
        $region48: #{tpu_custom_call.1} parent=11 // pred_fallthru
          _
        // Predicated region
        $region49: #{tpu_custom_call.1} parent=11 // pred_check
          %p477 = pneg %p339
        $region50: #{tpu_custom_call.1} parent=11 // pred_check_branch
          %479 = sbr.rel (%p477) target = $region52
        $region51: #{tpu_custom_call.1} parent=11 // pred_region
          _
        $region52: #{tpu_custom_call.1} parent=11 // pred_fallthru
          _
      $region12: #{tpu_custom_call.1} parent=5 // pred_fallthru
        _
      %p480 = scmp.lt.s32.totalorder %s35, 2
      // Predicated region
      $region53: #{tpu_custom_call.1} parent=5 // pred_check
        %p481 = pneg %p480
      $region54: #{tpu_custom_call.1} parent=5 // pred_check_branch
        %483 = sbr.rel (%p481) target = $region56
      $region55: #{tpu_custom_call.1} parent=5 // pred_region
        // Predicated region
        $region57: #{tpu_custom_call.1} parent=55 // pred_check
          %p484 = pneg %p69
        $region58: #{tpu_custom_call.1} parent=55 // pred_check_branch
          %486 = sbr.rel (%p484) target = $region60
        $region59: #{tpu_custom_call.1} parent=55 // pred_region
          %s487 = sand.u32 %s59, 1
          %s488 = scalar_lea.sflag [#allocation6], %s487
          %s489 = sand.u32 %s59, 1
          %s490 = smul.addr %s489, 16
          %s491 = scalar_lea.vmem [#allocation5], %s490
          %s492 = smul.u32 2, %s43
          %s494 = ssub.s32 256, 256
          %495 = vsyncadd %s488, %s494
          %s496 = smul.addr %s42, 2
          %s497 = sadd.s32 %s492, %s496
          %s498 = smul.addr %s497, 128
          %s499 = scalar_lea.hbm %s0, %s498
          %s500 = sshll.u32 %s491, 4
          %s501 = int_to_ptr.vmem [resolvable:$true] %s500
          %506 = dma.hbm_to_vmem [thread:$0]  %s499, 256, %s501, %s488, 128, 128, 8
        $region60: #{tpu_custom_call.1} parent=55 // pred_fallthru
          _
        // Predicated region
        $region61: #{tpu_custom_call.1} parent=55 // pred_check
          %p507 = pneg %p95
        $region62: #{tpu_custom_call.1} parent=55 // pred_check_branch
          %509 = sbr.rel (%p507) target = $region64
        $region63: #{tpu_custom_call.1} parent=55 // pred_region
          %s510 = sand.u32 %s35, 1
          %s511 = scalar_lea.sflag [#allocation9], %s510
          %s512 = sand.u32 %s85, 1
          %s513 = smul.addr %s512, 8
          %s514 = scalar_lea.vmem [#allocation8], %s513
          %s516 = ssub.s32 128, 128
          %517 = vsyncadd %s511, %s516
          %s518 = smul.addr %s42, 2
          %s519 = smul.addr %s518, 64
          %s520 = scalar_lea.hbm %s1, %s519
          %s521 = sshll.u32 %s514, 4
          %s522 = int_to_ptr.vmem [resolvable:$true] %s521
          %527 = dma.hbm_to_vmem [thread:$0]  %s520, 128, %s522, %s511, 64, 64, 4
        $region64: #{tpu_custom_call.1} parent=55 // pred_fallthru
          _
        // Predicated region
        $region65: #{tpu_custom_call.1} parent=55 // pred_check
          %p528 = pneg %p123
        $region66: #{tpu_custom_call.1} parent=55 // pred_check_branch
          %530 = sbr.rel (%p528) target = $region68
        $region67: #{tpu_custom_call.1} parent=55 // pred_region
          %s531 = sand.u32 %s35, 1
          %s532 = scalar_lea.sflag [#allocation9], %s531
          %s533 = sand.u32 %s113, 1
          %s534 = smul.addr %s533, 8
          %s535 = scalar_lea.vmem [#allocation10], %s534
          %s536 = smul.u32 2, %s43
          %s538 = ssub.s32 128, 128
          %539 = vsyncadd %s532, %s538
          %s540 = smul.addr %s42, 2
          %s541 = sadd.s32 %s536, %s540
          %s542 = smul.addr %s541, 64
          %s543 = scalar_lea.hbm %s2, %s542
          %s544 = sshll.u32 %s535, 4
          %s545 = int_to_ptr.vmem [resolvable:$true] %s544
          %550 = dma.hbm_to_vmem [thread:$0]  %s543, 128, %s545, %s532, 64, 64, 4
        $region68: #{tpu_custom_call.1} parent=55 // pred_fallthru
          _
      $region56: #{tpu_custom_call.1} parent=5 // pred_fallthru
        _
      %p551 = scmp.le.s32.totalorder 1, %s35
      %p552 = scmp.lt.s32.totalorder %s35, 3
      %p553 = pnand %p551, %p552
      %p554 = pneg %p553
      // Predicated region
      $region69: #{tpu_custom_call.1} parent=5 // pred_check
        _
      $region70: #{tpu_custom_call.1} parent=5 // pred_check_branch
        %556 = sbr.rel (%p553) target = $region72
      $region71: #{tpu_custom_call.1} parent=5 // pred_region
        %s557 = ssub.s32 %s35, 1
        %s558 = sand.u32 %s62, 1
        %s559 = scalar_lea.sflag [#allocation6], %s558
        %s560 = sand.u32 %s62, 1
        %s561 = smul.addr %s560, 16
        %s562 = scalar_lea.vmem [#allocation5], %s561
        // Predicated region
        $region73: #{tpu_custom_call.1} parent=71 // pred_check
          %p563 = pneg %p75
        $region74: #{tpu_custom_call.1} parent=71 // pred_check_branch
          %565 = sbr.rel (%p563) target = $region76
        $region75: #{tpu_custom_call.1} parent=71 // pred_region
          %566 = dma.done %s559, 256
        $region76: #{tpu_custom_call.1} parent=71 // pred_fallthru
          _
        %s567 = sand.u32 %s40, 1
        %s568 = scalar_lea.sflag [#allocation9], %s567
        %s569 = sand.u32 %s88, 1
        %s570 = smul.addr %s569, 8
        %s571 = scalar_lea.vmem [#allocation8], %s570
        // Predicated region
        $region77: #{tpu_custom_call.1} parent=71 // pred_check
          %p572 = pneg %p101
        $region78: #{tpu_custom_call.1} parent=71 // pred_check_branch
          %574 = sbr.rel (%p572) target = $region80
        $region79: #{tpu_custom_call.1} parent=71 // pred_region
          %575 = dma.done %s568, 128
        $region80: #{tpu_custom_call.1} parent=71 // pred_fallthru
          _
        %s576 = sand.u32 %s40, 1
        %s577 = scalar_lea.sflag [#allocation9], %s576
        %s578 = sand.u32 %s116, 1
        %s579 = smul.addr %s578, 8
        %s580 = scalar_lea.vmem [#allocation10], %s579
        // Predicated region
        $region81: #{tpu_custom_call.1} parent=71 // pred_check
          %p581 = pneg %p129
        $region82: #{tpu_custom_call.1} parent=71 // pred_check_branch
          %583 = sbr.rel (%p581) target = $region84
        $region83: #{tpu_custom_call.1} parent=71 // pred_region
          %584 = dma.done %s577, 128
        $region84: #{tpu_custom_call.1} parent=71 // pred_fallthru
          _
        // Predicated region
        $region85: #{tpu_custom_call.1} parent=71 // pred_check
          %p585 = pneg %p150
        $region86: #{tpu_custom_call.1} parent=71 // pred_check_branch
          %587 = sbr.rel (%p585) target = $region88
        $region87: #{tpu_custom_call.1} parent=71 // pred_region
          %588 = dma.done [#allocation12], 1024
        $region88: #{tpu_custom_call.1} parent=71 // pred_fallthru
          _
        // Predicated region
        $region89: #{tpu_custom_call.1} parent=71 // pred_check
          %p589 = pneg %p192
        $region90: #{tpu_custom_call.1} parent=71 // pred_check_branch
          %591 = sbr.rel (%p589) target = $region92
        $region91: #{tpu_custom_call.1} parent=71 // pred_region
          %592 = dma.done [#allocation12], 1024
        $region92: #{tpu_custom_call.1} parent=71 // pred_fallthru
          _
        // Predicated region
        $region93: #{tpu_custom_call.1} parent=71 // pred_check
          %p593 = pneg %p234
        $region94: #{tpu_custom_call.1} parent=71 // pred_check_branch
          %595 = sbr.rel (%p593) target = $region96
        $region95: #{tpu_custom_call.1} parent=71 // pred_region
          %596 = dma.done [#allocation15], 1024
        $region96: #{tpu_custom_call.1} parent=71 // pred_fallthru
          _
        // Predicated region
        $region97: #{tpu_custom_call.1} parent=71 // pred_check
          %p597 = pneg %p276
        $region98: #{tpu_custom_call.1} parent=71 // pred_check_branch
          %599 = sbr.rel (%p597) target = $region100
        $region99: #{tpu_custom_call.1} parent=71 // pred_region
          %600 = dma.done [#allocation15], 1024
        $region100: #{tpu_custom_call.1} parent=71 // pred_fallthru
          _
        %s601 = sand.u32 %s62, 1
        %s602 = scalar_lea.sflag [#allocation6], %s601
        %s603 = sand.u32 %s62, 1
        %s604 = smul.addr %s603, 16
        %s605 = scalar_lea.vmem [#allocation5], %s604
        %p606 = pneg %p75
        %p607 = pneg %p72
        %s608 = sand.u32 %s40, 1
        %s609 = scalar_lea.sflag [#allocation9], %s608
        %s610 = sand.u32 %s88, 1
        %s611 = smul.addr %s610, 8
        %s612 = scalar_lea.vmem [#allocation8], %s611
        %p613 = pneg %p101
        %p614 = pneg %p98
        %s615 = sand.u32 %s40, 1
        %s616 = scalar_lea.sflag [#allocation9], %s615
        %s617 = sand.u32 %s116, 1
        %s618 = smul.addr %s617, 8
        %s619 = scalar_lea.vmem [#allocation10], %s618
        %p620 = pneg %p129
        %p621 = pneg %p126
        %p622 = pneg %p150
        %p623 = pneg %p147
        %p624 = pneg %p171
        %p625 = pneg %p168
        %p626 = pneg %p192
        %p627 = pneg %p189
        %p628 = pneg %p213
        %p629 = pneg %p210
        %p630 = pneg %p234
        %p631 = pneg %p231
        %p632 = pneg %p255
        %p633 = pneg %p252
        %p634 = pneg %p276
        %p635 = pneg %p273
        %p636 = pneg %p297
        %p637 = pneg %p294
        %p638 = pneg %p318
        %p639 = pneg %p315
        %p640 = pneg %p339
        %p641 = pneg %p336
        %p642 = pneg %p367
        %p643 = pneg %p364
        %s644 = sand.u32 %s354, 1
        %s645 = scalar_lea.sflag [#allocation7], %s644
        %s646 = sand.u32 %s354, 1
        %s647 = smul.addr %s646, 16
        %s648 = scalar_lea.vmem [#allocation17], %s647
        %p649 = pneg %p395
        %p650 = pneg %p392
        %s651 = sand.u32 %s382, 1
        %s652 = scalar_lea.sflag [#allocation19], %s651
        %s653 = sand.u32 %s382, 1
        %s654 = smul.addr %s653, 32
        %s655 = scalar_lea.vmem [#allocation18], %s654
        %s656 = smul.u32 2, %s45
        %s657 = smul.u32 2, %s45
        %s658 = smul.u32 2, %s45
        %s659 = smul.u32 2, %s45
        %p661 = scmp.eq.s32.totalorder %s45, 0
        // Predicated region
        $region101: #{tpu_custom_call.1} parent=71 // pred_check
          %p662 = pneg %p661
        $region102: #{tpu_custom_call.1} parent=71 // pred_check_branch
          %664 = sbr.rel (%p662) target = $region104
        $region103: #{tpu_custom_call.1} parent=71 // pred_region
          %v665 = vld [vmem:[%s571] sm:$0xf]
          %v666 = vld [vmem:[%s571 + $0x4] sm:$0xf]
          %v667 = vld [vmem:[#allocation13] sm:$0xf]
          %v668 = vld [vmem:[#allocation13 + $0x4] sm:$0xf]
          %v669 = vld [vmem:[#allocation13 + $0x8] sm:$0xf]
          %v670 = vld [vmem:[#allocation13 + $0xc] sm:$0xf]
          %v671 = vld [vmem:[#allocation13 + $0x10] sm:$0xf]
          %v672 = vld [vmem:[#allocation13 + $0x14] sm:$0xf]
          %v673 = vld [vmem:[#allocation13 + $0x18] sm:$0xf]
          %v674 = vld [vmem:[#allocation13 + $0x1c] sm:$0xf]
          %v675 = vld [vmem:[#allocation13 + $0x20] sm:$0xf]
          %v676 = vld [vmem:[#allocation13 + $0x24] sm:$0xf]
          %v677 = vld [vmem:[#allocation13 + $0x28] sm:$0xf]
          %v678 = vld [vmem:[#allocation13 + $0x2c] sm:$0xf]
          %v679 = vld [vmem:[#allocation13 + $0x30] sm:$0xf]
          %v680 = vld [vmem:[#allocation13 + $0x34] sm:$0xf]
          %v681 = vld [vmem:[#allocation13 + $0x38] sm:$0xf]
          %v682 = vld [vmem:[#allocation13 + $0x3c] sm:$0xf]
          %v683 = vld [vmem:[%s6] sm:$0x1]
          %v685 = vlaneseq
          %v686 = vshrl.u32 %v685, 7
          %v687 = vsub.s32 0, %v686
          %v688 = vrot.slane %v683, %v687
          %v692 = vunpack.c.l.b16 %v665
          %v693 = vunpack.c.l.b16 %v666
          %v694 = vpack.c.b16 %v693, %v692
          %v712 = vunpack.c.l.b16 %v667
          %v713 = vunpack.c.l.b16 %v668
          %v714 = vunpack.c.l.b16 %v669
          %v715 = vunpack.c.l.b16 %v670
          %v716 = vunpack.c.l.b16 %v671
          %v717 = vunpack.c.l.b16 %v672
          %v718 = vunpack.c.l.b16 %v673
          %v719 = vunpack.c.l.b16 %v674
          %v720 = vunpack.c.l.b16 %v675
          %v721 = vunpack.c.l.b16 %v676
          %v722 = vunpack.c.l.b16 %v677
          %v723 = vunpack.c.l.b16 %v678
          %v724 = vunpack.c.l.b16 %v679
          %v725 = vunpack.c.l.b16 %v680
          %v726 = vunpack.c.l.b16 %v681
          %v727 = vunpack.c.l.b16 %v682
          %v728 = vpack.c.b16 %v713, %v712
          %v729 = vpack.c.b16 %v715, %v714
          %v730 = vpack.c.b16 %v717, %v716
          %v731 = vpack.c.b16 %v719, %v718
          %v732 = vpack.c.b16 %v721, %v720
          %v733 = vpack.c.b16 %v723, %v722
          %v734 = vpack.c.b16 %v725, %v724
          %v735 = vpack.c.b16 %v727, %v726
          %744 = vmatprep.subr.bf16.mxu0 0
          %745 = vmatpush1.bf16.msra.mxu0 %v735
          %746 = vmatprep.subr.bf16.mxu0 0
          %747 = vmatpush1.bf16.msra.mxu0 %v734
          %748 = vmatprep.subr.bf16.mxu0 0
          %749 = vmatpush1.bf16.msra.mxu0 %v733
          %750 = vmatprep.subr.bf16.mxu0 0
          %751 = vmatpush1.bf16.msra.mxu0 %v732
          %752 = vmatprep.subr.bf16.mxu0 0
          %753 = vmatpush1.bf16.msra.mxu0 %v731
          %754 = vmatprep.subr.bf16.mxu0 0
          %755 = vmatpush1.bf16.msra.mxu0 %v730
          %756 = vmatprep.subr.bf16.mxu0 0
          %757 = vmatpush1.bf16.msra.mxu0 %v729
          %758 = vmatprep.subr.bf16.mxu0 0
          %759 = vmatpush1.bf16.msra.mxu0 %v728
          %760 = vmatprep.subr.bf16.mxu0 0
          %761 = vmatpush2.bf16.msra.mxu0 0
          %762 = vmatprep.subr.bf16.mxu0 0
          %763 = vmatpush2.bf16.msra.mxu0 0
          %764 = vmatprep.subr.bf16.mxu0 0
          %765 = vmatpush2.bf16.msra.mxu0 0
          %766 = vmatprep.subr.bf16.mxu0 0
          %767 = vmatpush2.bf16.msra.mxu0 0
          %768 = vmatprep.subr.bf16.mxu0 0
          %769 = vmatpush2.bf16.msra.mxu0 0
          %770 = vmatprep.subr.bf16.mxu0 0
          %771 = vmatpush2.bf16.msra.mxu0 0
          %772 = vmatprep.subr.bf16.mxu0 0
          %773 = vmatpush2.bf16.msra.mxu0 0
          %774 = vmatprep.subr.bf16.mxu0 0
          %775 = vmatpush2.bf16.msra.mxu0 0
          %776 = vmatprep.mubr.bf16.mxu0 0
          %777 = vmatmul.mubr.bf16.gmra.mxu0 %v694
          %v778 = vpop.f32.mrf.mxu0
          %v779 = vadd.f32 %v688, %v778
          %v780 = vpop.f32.mrf.mxu0
          %v781 = vpop.f32.mrf.mxu0
          %v782 = vadd.f32 %v688, %v781
          %v783 = vpop.f32.mrf.mxu0
          %784 = vdwg.mxu0
          %v785 = vld [vmem:[#allocation14] sm:$0xf]
          %v786 = vld [vmem:[#allocation14 + $0x4] sm:$0xf]
          %v787 = vld [vmem:[#allocation14 + $0x8] sm:$0xf]
          %v788 = vld [vmem:[#allocation14 + $0xc] sm:$0xf]
          %v789 = vld [vmem:[#allocation14 + $0x10] sm:$0xf]
          %v790 = vld [vmem:[#allocation14 + $0x14] sm:$0xf]
          %v791 = vld [vmem:[#allocation14 + $0x18] sm:$0xf]
          %v792 = vld [vmem:[#allocation14 + $0x1c] sm:$0xf]
          %v793 = vld [vmem:[#allocation14 + $0x20] sm:$0xf]
          %v794 = vld [vmem:[#allocation14 + $0x24] sm:$0xf]
          %v795 = vld [vmem:[#allocation14 + $0x28] sm:$0xf]
          %v796 = vld [vmem:[#allocation14 + $0x2c] sm:$0xf]
          %v797 = vld [vmem:[#allocation14 + $0x30] sm:$0xf]
          %v798 = vld [vmem:[#allocation14 + $0x34] sm:$0xf]
          %v799 = vld [vmem:[#allocation14 + $0x38] sm:$0xf]
          %v800 = vld [vmem:[#allocation14 + $0x3c] sm:$0xf]
          %v801 = vld [vmem:[%s8] sm:$0x1]
          %v803 = vlaneseq
          %v804 = vshrl.u32 %v803, 7
          %v805 = vsub.s32 0, %v804
          %v806 = vrot.slane %v801, %v805
          %v824 = vunpack.c.l.b16 %v785
          %v825 = vunpack.c.l.b16 %v786
          %v826 = vunpack.c.l.b16 %v787
          %v827 = vunpack.c.l.b16 %v788
          %v828 = vunpack.c.l.b16 %v789
          %v829 = vunpack.c.l.b16 %v790
          %v830 = vunpack.c.l.b16 %v791
          %v831 = vunpack.c.l.b16 %v792
          %v832 = vunpack.c.l.b16 %v793
          %v833 = vunpack.c.l.b16 %v794
          %v834 = vunpack.c.l.b16 %v795
          %v835 = vunpack.c.l.b16 %v796
          %v836 = vunpack.c.l.b16 %v797
          %v837 = vunpack.c.l.b16 %v798
          %v838 = vunpack.c.l.b16 %v799
          %v839 = vunpack.c.l.b16 %v800
          %v840 = vpack.c.b16 %v825, %v824
          %v841 = vpack.c.b16 %v827, %v826
          %v842 = vpack.c.b16 %v829, %v828
          %v843 = vpack.c.b16 %v831, %v830
          %v844 = vpack.c.b16 %v833, %v832
          %v845 = vpack.c.b16 %v835, %v834
          %v846 = vpack.c.b16 %v837, %v836
          %v847 = vpack.c.b16 %v839, %v838
          %856 = vmatprep.subr.bf16.mxu0 0
          %857 = vmatpush1.bf16.msra.mxu0 %v847
          %858 = vmatprep.subr.bf16.mxu0 0
          %859 = vmatpush1.bf16.msra.mxu0 %v846
          %860 = vmatprep.subr.bf16.mxu0 0
          %861 = vmatpush1.bf16.msra.mxu0 %v845
          %862 = vmatprep.subr.bf16.mxu0 0
          %863 = vmatpush1.bf16.msra.mxu0 %v844
          %864 = vmatprep.subr.bf16.mxu0 0
          %865 = vmatpush1.bf16.msra.mxu0 %v843
          %866 = vmatprep.subr.bf16.mxu0 0
          %867 = vmatpush1.bf16.msra.mxu0 %v842
          %868 = vmatprep.subr.bf16.mxu0 0
          %869 = vmatpush1.bf16.msra.mxu0 %v841
          %870 = vmatprep.subr.bf16.mxu0 0
          %871 = vmatpush1.bf16.msra.mxu0 %v840
          %872 = vmatprep.subr.bf16.mxu0 0
          %873 = vmatpush2.bf16.msra.mxu0 0
          %874 = vmatprep.subr.bf16.mxu0 0
          %875 = vmatpush2.bf16.msra.mxu0 0
          %876 = vmatprep.subr.bf16.mxu0 0
          %877 = vmatpush2.bf16.msra.mxu0 0
          %878 = vmatprep.subr.bf16.mxu0 0
          %879 = vmatpush2.bf16.msra.mxu0 0
          %880 = vmatprep.subr.bf16.mxu0 0
          %881 = vmatpush2.bf16.msra.mxu0 0
          %882 = vmatprep.subr.bf16.mxu0 0
          %883 = vmatpush2.bf16.msra.mxu0 0
          %884 = vmatprep.subr.bf16.mxu0 0
          %885 = vmatpush2.bf16.msra.mxu0 0
          %886 = vmatprep.subr.bf16.mxu0 0
          %887 = vmatpush2.bf16.msra.mxu0 0
          %888 = vmatprep.mubr.bf16.mxu0 0
          %889 = vmatmul.mubr.bf16.gmra.mxu0 %v694
          %v890 = vpop.f32.mrf.mxu0
          %v891 = vadd.f32 %v806, %v890
          %v892 = vpop.f32.mrf.mxu0
          %v893 = vpop.f32.mrf.mxu0
          %v894 = vadd.f32 %v806, %v893
          %v895 = vpop.f32.mrf.mxu0
          %896 = vdwg.mxu0
          %v897 = vpack.c.bf16 %v782, %v779
          %v899 = vunpack.c.l.b16 %v897
          %v900 = vunpack.c.h.b16 %v897
          %v901 = vpack.c.b16 %v899, %v899
          %v902 = vpack.c.b16 %v900, %v900
          %vm905 = vcmask 257024
          %906 = vst.msk [vmem:[#allocation2] sm:$0xf] %vm905, %v901
          %907 = vst.msk [vmem:[#allocation2 + $0x4] sm:$0xf] %vm905, %v902
          %v908 = vpack.c.bf16 %v894, %v891
          %v910 = vunpack.c.l.b16 %v908
          %v911 = vunpack.c.h.b16 %v908
          %v912 = vpack.c.b16 %v910, %v910
          %v913 = vpack.c.b16 %v911, %v911
          %916 = vst.msk [vmem:[#allocation3] sm:$0xf] %vm905, %v912
          %917 = vst.msk [vmem:[#allocation3 + $0x4] sm:$0xf] %vm905, %v913
          %918 = vrot.lane.b32.xlu0 %v901, 96
          %v919 = vpop.permute.xlu0 %918
          %920 = vrot.lane.b32.xlu0 %v902, 96
          %v921 = vpop.permute.xlu0 %920
          %s924 = scalar_lea.vmem [#allocation2], 8
          %925 = vst.msk [vmem:[%s924] sm:$0xf] %vm905, %v919
          %926 = vst.msk [vmem:[%s924 + $0x4] sm:$0xf] %vm905, %v921
          %927 = vrot.lane.b32.xlu0 %v912, 96
          %v928 = vpop.permute.xlu0 %927
          %929 = vrot.lane.b32.xlu0 %v913, 96
          %v930 = vpop.permute.xlu0 %929
          %s933 = scalar_lea.vmem [#allocation3], 8
          %934 = vst.msk [vmem:[%s933] sm:$0xf] %vm905, %v928
          %935 = vst.msk [vmem:[%s933 + $0x4] sm:$0xf] %vm905, %v930
          %936 = vrot.lane.b32.xlu0 %v901, 64
          %v937 = vpop.permute.xlu0 %936
          %938 = vrot.lane.b32.xlu0 %v902, 64
          %v939 = vpop.permute.xlu0 %938
          %s942 = scalar_lea.vmem [#allocation2], 16
          %943 = vst.msk [vmem:[%s942] sm:$0xf] %vm905, %v937
          %944 = vst.msk [vmem:[%s942 + $0x4] sm:$0xf] %vm905, %v939
          %945 = vrot.lane.b32.xlu0 %v912, 64
          %v946 = vpop.permute.xlu0 %945
          %947 = vrot.lane.b32.xlu0 %v913, 64
          %v948 = vpop.permute.xlu0 %947
          %s951 = scalar_lea.vmem [#allocation3], 16
          %952 = vst.msk [vmem:[%s951] sm:$0xf] %vm905, %v946
          %953 = vst.msk [vmem:[%s951 + $0x4] sm:$0xf] %vm905, %v948
          %954 = vrot.lane.b32.xlu0 %v901, 32
          %v955 = vpop.permute.xlu0 %954
          %956 = vrot.lane.b32.xlu0 %v902, 32
          %v957 = vpop.permute.xlu0 %956
          %s960 = scalar_lea.vmem [#allocation2], 24
          %961 = vst.msk [vmem:[%s960] sm:$0xf] %vm905, %v955
          %962 = vst.msk [vmem:[%s960 + $0x4] sm:$0xf] %vm905, %v957
          %963 = vrot.lane.b32.xlu0 %v912, 32
          %v964 = vpop.permute.xlu0 %963
          %965 = vrot.lane.b32.xlu0 %v913, 32
          %v966 = vpop.permute.xlu0 %965
          %s969 = scalar_lea.vmem [#allocation3], 24
          %970 = vst.msk [vmem:[%s969] sm:$0xf] %vm905, %v964
          %971 = vst.msk [vmem:[%s969 + $0x4] sm:$0xf] %vm905, %v966
        $region104: #{tpu_custom_call.1} parent=71 // pred_fallthru
          _
        %v972 = vld [vmem:[%s562] sm:$0xff]
        %v973 = vld [vmem:[%s562 + $0x8] sm:$0xff]
        %v974 = vpack.c.bf16 %v973, %v972
        %v975 = vld [vmem:[#allocation11] sm:$0xf]
        %v976 = vld [vmem:[#allocation11 + $0x4] sm:$0xf]
        %v977 = vld [vmem:[#allocation11 + $0x8] sm:$0xf]
        %v978 = vld [vmem:[#allocation11 + $0xc] sm:$0xf]
        %v979 = vld [vmem:[#allocation11 + $0x10] sm:$0xf]
        %v980 = vld [vmem:[#allocation11 + $0x14] sm:$0xf]
        %v981 = vld [vmem:[#allocation11 + $0x18] sm:$0xf]
        %v982 = vld [vmem:[#allocation11 + $0x1c] sm:$0xf]
        %v983 = vld [vmem:[#allocation11 + $0x20] sm:$0xf]
        %v984 = vld [vmem:[#allocation11 + $0x24] sm:$0xf]
        %v985 = vld [vmem:[#allocation11 + $0x28] sm:$0xf]
        %v986 = vld [vmem:[#allocation11 + $0x2c] sm:$0xf]
        %v987 = vld [vmem:[#allocation11 + $0x30] sm:$0xf]
        %v988 = vld [vmem:[#allocation11 + $0x34] sm:$0xf]
        %v989 = vld [vmem:[#allocation11 + $0x38] sm:$0xf]
        %v990 = vld [vmem:[#allocation11 + $0x3c] sm:$0xf]
        %v991 = vld [vmem:[%s4] sm:$0x1]
        %v993 = vlaneseq
        %v994 = vshrl.u32 %v993, 7
        %v995 = vsub.s32 0, %v994
        %v996 = vrot.slane %v991, %v995
        %v1014 = vunpack.c.l.b16 %v975
        %v1015 = vunpack.c.l.b16 %v976
        %v1016 = vunpack.c.l.b16 %v977
        %v1017 = vunpack.c.l.b16 %v978
        %v1018 = vunpack.c.l.b16 %v979
        %v1019 = vunpack.c.l.b16 %v980
        %v1020 = vunpack.c.l.b16 %v981
        %v1021 = vunpack.c.l.b16 %v982
        %v1022 = vunpack.c.l.b16 %v983
        %v1023 = vunpack.c.l.b16 %v984
        %v1024 = vunpack.c.l.b16 %v985
        %v1025 = vunpack.c.l.b16 %v986
        %v1026 = vunpack.c.l.b16 %v987
        %v1027 = vunpack.c.l.b16 %v988
        %v1028 = vunpack.c.l.b16 %v989
        %v1029 = vunpack.c.l.b16 %v990
        %v1030 = vpack.c.b16 %v1015, %v1014
        %v1031 = vpack.c.b16 %v1017, %v1016
        %v1032 = vpack.c.b16 %v1019, %v1018
        %v1033 = vpack.c.b16 %v1021, %v1020
        %v1034 = vpack.c.b16 %v1023, %v1022
        %v1035 = vpack.c.b16 %v1025, %v1024
        %v1036 = vpack.c.b16 %v1027, %v1026
        %v1037 = vpack.c.b16 %v1029, %v1028
        %1046 = vmatprep.subr.bf16.mxu0 0
        %1047 = vmatpush1.bf16.msra.mxu0 %v1037
        %1048 = vmatprep.subr.bf16.mxu0 0
        %1049 = vmatpush1.bf16.msra.mxu0 %v1036
        %1050 = vmatprep.subr.bf16.mxu0 0
        %1051 = vmatpush1.bf16.msra.mxu0 %v1035
        %1052 = vmatprep.subr.bf16.mxu0 0
        %1053 = vmatpush1.bf16.msra.mxu0 %v1034
        %1054 = vmatprep.subr.bf16.mxu0 0
        %1055 = vmatpush1.bf16.msra.mxu0 %v1033
        %1056 = vmatprep.subr.bf16.mxu0 0
        %1057 = vmatpush1.bf16.msra.mxu0 %v1032
        %1058 = vmatprep.subr.bf16.mxu0 0
        %1059 = vmatpush1.bf16.msra.mxu0 %v1031
        %1060 = vmatprep.subr.bf16.mxu0 0
        %1061 = vmatpush1.bf16.msra.mxu0 %v1030
        %1062 = vmatprep.subr.bf16.mxu0 0
        %1063 = vmatpush2.bf16.msra.mxu0 0
        %1064 = vmatprep.subr.bf16.mxu0 0
        %1065 = vmatpush2.bf16.msra.mxu0 0
        %1066 = vmatprep.subr.bf16.mxu0 0
        %1067 = vmatpush2.bf16.msra.mxu0 0
        %1068 = vmatprep.subr.bf16.mxu0 0
        %1069 = vmatpush2.bf16.msra.mxu0 0
        %1070 = vmatprep.subr.bf16.mxu0 0
        %1071 = vmatpush2.bf16.msra.mxu0 0
        %1072 = vmatprep.subr.bf16.mxu0 0
        %1073 = vmatpush2.bf16.msra.mxu0 0
        %1074 = vmatprep.subr.bf16.mxu0 0
        %1075 = vmatpush2.bf16.msra.mxu0 0
        %1076 = vmatprep.subr.bf16.mxu0 0
        %1077 = vmatpush2.bf16.msra.mxu0 0
        %1078 = vmatprep.mubr.bf16.mxu0 0
        %1079 = vmatmul.mubr.bf16.gmra.mxu0 %v974
        %v1080 = vpop.f32.mrf.mxu0
        %v1081 = vadd.f32 %v996, %v1080
        %v1082 = vpop.f32.mrf.mxu0
        %v1083 = vpop.f32.mrf.mxu0
        %v1084 = vadd.f32 %v996, %v1083
        %v1085 = vpop.f32.mrf.mxu0
        %1086 = vdwg.mxu0
        %v1087 = vmul.f32 %v1081, 0.17677669
        %v1088 = vmul.f32 %v1084, 0.17677669
        %v1089 = vpack.c.bf16 %v1088, %v1087
        %v1090 = vld [vmem:[%s580] sm:$0xf]
        %v1091 = vld [vmem:[%s580 + $0x4] sm:$0xf]
        %v1092 = vunpack.c.l.bf16 %v1090
        %v1093 = vunpack.c.l.bf16 %v1091
        %v1094 = vsub.f32 %v1092, 1.0
        %v1095 = vsub.f32 %v1093, 1.0
        %v1096 = vmul.f32 %v1094, 1e+09
        %v1097 = vmul.f32 %v1095, 1e+09
        %v1098 = vld [vmem:[#allocation2] sm:$0xf]
        %v1099 = vld [vmem:[#allocation2 + $0x4] sm:$0xf]
        %v1102 = vunpack.c.l.b16 %v1098
        %v1103 = vunpack.c.l.b16 %v1099
        %v1104 = vpack.c.b16 %v1103, %v1102
        %vm1105 = vcmask 261120
        %v1107 = vsel %vm1105, %v1089, 0
        %v1110 = vsel %vm1105, %v1104, 0
        %1112 = vmatprep.subr.bf16.mxu0 0
        %1113 = vmatpush1.bf16.xpose.msra.mxu0 0
        %1114 = vmatprep.subr.bf16.mxu0 0
        %1115 = vmatpush1.bf16.xpose.msra.mxu0 0
        %1116 = vmatprep.subr.bf16.mxu0 0
        %1117 = vmatpush1.bf16.xpose.msra.mxu0 0
        %1118 = vmatprep.subr.bf16.mxu0 0
        %1119 = vmatpush1.bf16.xpose.msra.mxu0 0
        %1120 = vmatprep.subr.bf16.mxu0 0
        %1121 = vmatpush1.bf16.xpose.msra.mxu0 0
        %1122 = vmatprep.subr.bf16.mxu0 0
        %1123 = vmatpush1.bf16.xpose.msra.mxu0 0
        %1124 = vmatprep.subr.bf16.mxu0 0
        %1125 = vmatpush1.bf16.xpose.msra.mxu0 0
        %1126 = vmatprep.subr.bf16.mxu0 0
        %1127 = vmatpush1.bf16.xpose.msra.mxu0 %v1110
        %1128 = vmatprep.subr.bf16.mxu0 0
        %1129 = vmatpush2.bf16.xpose.msra.mxu0 0
        %1130 = vmatprep.subr.bf16.mxu0 0
        %1131 = vmatpush2.bf16.xpose.msra.mxu0 0
        %1132 = vmatprep.subr.bf16.mxu0 0
        %1133 = vmatpush2.bf16.xpose.msra.mxu0 0
        %1134 = vmatprep.subr.bf16.mxu0 0
        %1135 = vmatpush2.bf16.xpose.msra.mxu0 0
        %1136 = vmatprep.subr.bf16.mxu0 0
        %1137 = vmatpush2.bf16.xpose.msra.mxu0 0
        %1138 = vmatprep.subr.bf16.mxu0 0
        %1139 = vmatpush2.bf16.xpose.msra.mxu0 0
        %1140 = vmatprep.subr.bf16.mxu0 0
        %1141 = vmatpush2.bf16.xpose.msra.mxu0 0
        %1142 = vmatprep.subr.bf16.mxu0 0
        %1143 = vmatpush2.bf16.xpose.msra.mxu0 0
        %1144 = vmatprep.mubr.bf16.mxu0 0
        %1145 = vmatmul.mubr.bf16.gmra.mxu0 %v1107
        %v1146 = vpop.f32.mrf.mxu0
        %v1147 = vadd.f32 %v1096, %v1146
        %v1148 = vpop.f32.mrf.mxu0
        %v1149 = vpop.f32.mrf.mxu0
        %v1150 = vadd.f32 %v1097, %v1149
        %v1151 = vpop.f32.mrf.mxu0
        %1152 = vdwg.mxu0
        %vm1153 = vcmask 130048
        %v1154 = vsel %vm1153, %v1147, -inf
        %1155 = vmax.xlane.f32.xlu0 %v1154
        %v1156 = vpop.xlane.xlu0 %1155
        %v1157 = vsel %vm1153, %v1150, -inf
        %1158 = vmax.xlane.f32.xlu0 %v1157
        %v1159 = vpop.xlane.xlu0 %1158
        %v1160 = vsub.f32 %v1147, %v1156
        %v1161 = vsub.f32 %v1150, %v1159
        %v1162 = vmul.f32 %v1160, 1.442695
        %v1163 = vpow.pop %v1162
        %v1164 = vmul.f32 %v1161, 1.442695
        %v1165 = vpow.pop %v1164
        %v1166 = vsel %vm1153, %v1163, 0.0
        %1167 = vadd.xlane.f32.xlu0 %v1166
        %v1168 = vpop.xlane.xlu0 %1167
        %v1169 = vsel %vm1153, %v1165, 0.0
        %1170 = vadd.xlane.f32.xlu0 %v1169
        %v1171 = vpop.xlane.xlu0 %1170
        %v1172 = vrcp.pop %v1168
        %v1173 = vrcp.pop %v1171
        %v1174 = vmul.f32 %v1163, %v1172
        %v1175 = vmul.f32 %v1165, %v1173
        %v1176 = vpack.c.bf16 %v1175, %v1174
        %v1178 = vunpack.c.l.b16 %v1176
        %v1179 = vunpack.c.h.b16 %v1176
        %v1180 = vpack.c.b16 %v1178, %v1178
        %v1181 = vpack.c.b16 %v1179, %v1179
        %vm1184 = vcmask 125952
        %1185 = vst.msk [vmem:[%s655] sm:$0xf] %vm1184, %v1180
        %1186 = vst.msk [vmem:[%s655 + $0x4] sm:$0xf] %vm1184, %v1181
        %v1187 = vld [vmem:[#allocation3] sm:$0xf]
        %v1188 = vld [vmem:[#allocation3 + $0x4] sm:$0xf]
        %v1191 = vunpack.c.l.b16 %v1187
        %v1192 = vunpack.c.l.b16 %v1188
        %v1193 = vpack.c.b16 %v1192, %v1191
        %v1196 = vsel %vm1153, %v1176, 0
        %1198 = vmatprep.subr.bf16.mxu0 0
        %1199 = vmatpush1.bf16.msra.mxu0 0
        %1200 = vmatprep.subr.bf16.mxu0 0
        %1201 = vmatpush1.bf16.msra.mxu0 0
        %1202 = vmatprep.subr.bf16.mxu0 0
        %1203 = vmatpush1.bf16.msra.mxu0 0
        %1204 = vmatprep.subr.bf16.mxu0 0
        %1205 = vmatpush1.bf16.msra.mxu0 0
        %1206 = vmatprep.subr.bf16.mxu0 0
        %1207 = vmatpush1.bf16.msra.mxu0 0
        %1208 = vmatprep.subr.bf16.mxu0 0
        %1209 = vmatpush1.bf16.msra.mxu0 0
        %1210 = vmatprep.subr.bf16.mxu0 0
        %1211 = vmatpush1.bf16.msra.mxu0 0
        %1212 = vmatprep.subr.bf16.mxu0 0
        %1213 = vmatpush1.bf16.msra.mxu0 %v1193
        %1214 = vmatprep.subr.bf16.mxu0 0
        %1215 = vmatpush2.bf16.msra.mxu0 0
        %1216 = vmatprep.subr.bf16.mxu0 0
        %1217 = vmatpush2.bf16.msra.mxu0 0
        %1218 = vmatprep.subr.bf16.mxu0 0
        %1219 = vmatpush2.bf16.msra.mxu0 0
        %1220 = vmatprep.subr.bf16.mxu0 0
        %1221 = vmatpush2.bf16.msra.mxu0 0
        %1222 = vmatprep.subr.bf16.mxu0 0
        %1223 = vmatpush2.bf16.msra.mxu0 0
        %1224 = vmatprep.subr.bf16.mxu0 0
        %1225 = vmatpush2.bf16.msra.mxu0 0
        %1226 = vmatprep.subr.bf16.mxu0 0
        %1227 = vmatpush2.bf16.msra.mxu0 0
        %1228 = vmatprep.subr.bf16.mxu0 0
        %1229 = vmatpush2.bf16.msra.mxu0 0
        %1230 = vmatprep.mubr.bf16.mxu0 0
        %1231 = vmatmul.mubr.bf16.gmra.mxu0 %v1196
        %v1232 = vpop.f32.mrf.mxu0
        %v1233 = vadd.f32 0.0, %v1232
        %v1234 = vpop.f32.mrf.mxu0
        %v1235 = vpop.f32.mrf.mxu0
        %v1236 = vadd.f32 0.0, %v1235
        %v1237 = vpop.f32.mrf.mxu0
        %1238 = vdwg.mxu0
        %v1239 = vpack.c.bf16 %v1236, %v1233
        %v1241 = vunpack.c.l.b16 %v1239
        %v1242 = vunpack.c.h.b16 %v1239
        %v1243 = vpack.c.b16 %v1241, %v1241
        %v1244 = vpack.c.b16 %v1242, %v1242
        %vm1247 = vcmask 257024
        %1248 = vst.msk [vmem:[#allocation4] sm:$0xf] %vm1247, %v1243
        %1249 = vst.msk [vmem:[#allocation4 + $0x4] sm:$0xf] %vm1247, %v1244
        %s1250 = scalar_lea.vmem [#allocation2], 8
        %v1251 = vld [vmem:[%s1250] sm:$0xf]
        %v1252 = vld [vmem:[%s1250 + $0x4] sm:$0xf]
        %1254 = vrot.lane.b32.xlu0 %v1089, 96
        %v1255 = vpop.permute.xlu0 %1254
        %v1258 = vunpack.c.l.b16 %v1251
        %v1259 = vunpack.c.l.b16 %v1252
        %v1260 = vpack.c.b16 %v1259, %v1258
        %v1262 = vsel %vm1105, %v1255, 0
        %v1265 = vsel %vm1105, %v1260, 0
        %1267 = vmatprep.subr.bf16.mxu0 0
        %1268 = vmatpush1.bf16.xpose.msra.mxu0 0
        %1269 = vmatprep.subr.bf16.mxu0 0
        %1270 = vmatpush1.bf16.xpose.msra.mxu0 0
        %1271 = vmatprep.subr.bf16.mxu0 0
        %1272 = vmatpush1.bf16.xpose.msra.mxu0 0
        %1273 = vmatprep.subr.bf16.mxu0 0
        %1274 = vmatpush1.bf16.xpose.msra.mxu0 0
        %1275 = vmatprep.subr.bf16.mxu0 0
        %1276 = vmatpush1.bf16.xpose.msra.mxu0 0
        %1277 = vmatprep.subr.bf16.mxu0 0
        %1278 = vmatpush1.bf16.xpose.msra.mxu0 0
        %1279 = vmatprep.subr.bf16.mxu0 0
        %1280 = vmatpush1.bf16.xpose.msra.mxu0 0
        %1281 = vmatprep.subr.bf16.mxu0 0
        %1282 = vmatpush1.bf16.xpose.msra.mxu0 %v1265
        %1283 = vmatprep.subr.bf16.mxu0 0
        %1284 = vmatpush2.bf16.xpose.msra.mxu0 0
        %1285 = vmatprep.subr.bf16.mxu0 0
        %1286 = vmatpush2.bf16.xpose.msra.mxu0 0
        %1287 = vmatprep.subr.bf16.mxu0 0
        %1288 = vmatpush2.bf16.xpose.msra.mxu0 0
        %1289 = vmatprep.subr.bf16.mxu0 0
        %1290 = vmatpush2.bf16.xpose.msra.mxu0 0
        %1291 = vmatprep.subr.bf16.mxu0 0
        %1292 = vmatpush2.bf16.xpose.msra.mxu0 0
        %1293 = vmatprep.subr.bf16.mxu0 0
        %1294 = vmatpush2.bf16.xpose.msra.mxu0 0
        %1295 = vmatprep.subr.bf16.mxu0 0
        %1296 = vmatpush2.bf16.xpose.msra.mxu0 0
        %1297 = vmatprep.subr.bf16.mxu0 0
        %1298 = vmatpush2.bf16.xpose.msra.mxu0 0
        %1299 = vmatprep.mubr.bf16.mxu0 0
        %1300 = vmatmul.mubr.bf16.gmra.mxu0 %v1262
        %v1301 = vpop.f32.mrf.mxu0
        %v1302 = vadd.f32 %v1096, %v1301
        %v1303 = vpop.f32.mrf.mxu0
        %v1304 = vpop.f32.mrf.mxu0
        %v1305 = vadd.f32 %v1097, %v1304
        %v1306 = vpop.f32.mrf.mxu0
        %1307 = vdwg.mxu0
        %v1308 = vsel %vm1153, %v1302, -inf
        %1309 = vmax.xlane.f32.xlu0 %v1308
        %v1310 = vpop.xlane.xlu0 %1309
        %v1311 = vsel %vm1153, %v1305, -inf
        %1312 = vmax.xlane.f32.xlu0 %v1311
        %v1313 = vpop.xlane.xlu0 %1312
        %v1314 = vsub.f32 %v1302, %v1310
        %v1315 = vsub.f32 %v1305, %v1313
        %v1316 = vmul.f32 %v1314, 1.442695
        %v1317 = vpow.pop %v1316
        %v1318 = vmul.f32 %v1315, 1.442695
        %v1319 = vpow.pop %v1318
        %v1320 = vsel %vm1153, %v1317, 0.0
        %1321 = vadd.xlane.f32.xlu0 %v1320
        %v1322 = vpop.xlane.xlu0 %1321
        %v1323 = vsel %vm1153, %v1319, 0.0
        %1324 = vadd.xlane.f32.xlu0 %v1323
        %v1325 = vpop.xlane.xlu0 %1324
        %v1326 = vrcp.pop %v1322
        %v1327 = vrcp.pop %v1325
        %v1328 = vmul.f32 %v1317, %v1326
        %v1329 = vmul.f32 %v1319, %v1327
        %v1330 = vpack.c.bf16 %v1329, %v1328
        %v1332 = vunpack.c.l.b16 %v1330
        %v1333 = vunpack.c.h.b16 %v1330
        %v1334 = vpack.c.b16 %v1332, %v1332
        %v1335 = vpack.c.b16 %v1333, %v1333
        %s1338 = scalar_lea.vmem %s655, 8 [#allocation18]
        %1339 = vst.msk [vmem:[%s1338] sm:$0xf] %vm1184, %v1334
        %1340 = vst.msk [vmem:[%s1338 + $0x4] sm:$0xf] %vm1184, %v1335
        %s1341 = scalar_lea.vmem [#allocation3], 8
        %v1342 = vld [vmem:[%s1341] sm:$0xf]
        %v1343 = vld [vmem:[%s1341 + $0x4] sm:$0xf]
        %v1346 = vunpack.c.l.b16 %v1342
        %v1347 = vunpack.c.l.b16 %v1343
        %v1348 = vpack.c.b16 %v1347, %v1346
        %v1351 = vsel %vm1153, %v1330, 0
        %1353 = vmatprep.subr.bf16.mxu0 0
        %1354 = vmatpush1.bf16.msra.mxu0 0
        %1355 = vmatprep.subr.bf16.mxu0 0
        %1356 = vmatpush1.bf16.msra.mxu0 0
        %1357 = vmatprep.subr.bf16.mxu0 0
        %1358 = vmatpush1.bf16.msra.mxu0 0
        %1359 = vmatprep.subr.bf16.mxu0 0
        %1360 = vmatpush1.bf16.msra.mxu0 0
        %1361 = vmatprep.subr.bf16.mxu0 0
        %1362 = vmatpush1.bf16.msra.mxu0 0
        %1363 = vmatprep.subr.bf16.mxu0 0
        %1364 = vmatpush1.bf16.msra.mxu0 0
        %1365 = vmatprep.subr.bf16.mxu0 0
        %1366 = vmatpush1.bf16.msra.mxu0 0
        %1367 = vmatprep.subr.bf16.mxu0 0
        %1368 = vmatpush1.bf16.msra.mxu0 %v1348
        %1369 = vmatprep.subr.bf16.mxu0 0
        %1370 = vmatpush2.bf16.msra.mxu0 0
        %1371 = vmatprep.subr.bf16.mxu0 0
        %1372 = vmatpush2.bf16.msra.mxu0 0
        %1373 = vmatprep.subr.bf16.mxu0 0
        %1374 = vmatpush2.bf16.msra.mxu0 0
        %1375 = vmatprep.subr.bf16.mxu0 0
        %1376 = vmatpush2.bf16.msra.mxu0 0
        %1377 = vmatprep.subr.bf16.mxu0 0
        %1378 = vmatpush2.bf16.msra.mxu0 0
        %1379 = vmatprep.subr.bf16.mxu0 0
        %1380 = vmatpush2.bf16.msra.mxu0 0
        %1381 = vmatprep.subr.bf16.mxu0 0
        %1382 = vmatpush2.bf16.msra.mxu0 0
        %1383 = vmatprep.subr.bf16.mxu0 0
        %1384 = vmatpush2.bf16.msra.mxu0 0
        %1385 = vmatprep.mubr.bf16.mxu0 0
        %1386 = vmatmul.mubr.bf16.gmra.mxu0 %v1351
        %v1387 = vpop.f32.mrf.mxu0
        %v1388 = vadd.f32 0.0, %v1387
        %v1389 = vpop.f32.mrf.mxu0
        %v1390 = vpop.f32.mrf.mxu0
        %v1391 = vadd.f32 0.0, %v1390
        %v1392 = vpop.f32.mrf.mxu0
        %1393 = vdwg.mxu0
        %v1394 = vpack.c.bf16 %v1391, %v1388
        %v1396 = vunpack.c.l.b16 %v1394
        %v1397 = vunpack.c.h.b16 %v1394
        %v1398 = vpack.c.b16 %v1396, %v1396
        %v1399 = vpack.c.b16 %v1397, %v1397
        %1400 = vrot.lane.b32.xlu0 %v1398, 32
        %v1401 = vpop.permute.xlu0 %1400
        %1402 = vrot.lane.b32.xlu0 %v1399, 32
        %v1403 = vpop.permute.xlu0 %1402
        %vm1406 = vcmask 519424
        %1407 = vst.msk [vmem:[#allocation4] sm:$0xf] %vm1406, %v1401
        %1408 = vst.msk [vmem:[#allocation4 + $0x4] sm:$0xf] %vm1406, %v1403
        %s1409 = scalar_lea.vmem [#allocation2], 16
        %v1410 = vld [vmem:[%s1409] sm:$0xf]
        %v1411 = vld [vmem:[%s1409 + $0x4] sm:$0xf]
        %1412 = vrot.lane.b32.xlu0 %v1089, 64
        %v1413 = vpop.permute.xlu0 %1412
        %v1416 = vunpack.c.l.b16 %v1410
        %v1417 = vunpack.c.l.b16 %v1411
        %v1418 = vpack.c.b16 %v1417, %v1416
        %v1420 = vsel %vm1105, %v1413, 0
        %v1423 = vsel %vm1105, %v1418, 0
        %1425 = vmatprep.subr.bf16.mxu0 0
        %1426 = vmatpush1.bf16.xpose.msra.mxu0 0
        %1427 = vmatprep.subr.bf16.mxu0 0
        %1428 = vmatpush1.bf16.xpose.msra.mxu0 0
        %1429 = vmatprep.subr.bf16.mxu0 0
        %1430 = vmatpush1.bf16.xpose.msra.mxu0 0
        %1431 = vmatprep.subr.bf16.mxu0 0
        %1432 = vmatpush1.bf16.xpose.msra.mxu0 0
        %1433 = vmatprep.subr.bf16.mxu0 0
        %1434 = vmatpush1.bf16.xpose.msra.mxu0 0
        %1435 = vmatprep.subr.bf16.mxu0 0
        %1436 = vmatpush1.bf16.xpose.msra.mxu0 0
        %1437 = vmatprep.subr.bf16.mxu0 0
        %1438 = vmatpush1.bf16.xpose.msra.mxu0 0
        %1439 = vmatprep.subr.bf16.mxu0 0
        %1440 = vmatpush1.bf16.xpose.msra.mxu0 %v1423
        %1441 = vmatprep.subr.bf16.mxu0 0
        %1442 = vmatpush2.bf16.xpose.msra.mxu0 0
        %1443 = vmatprep.subr.bf16.mxu0 0
        %1444 = vmatpush2.bf16.xpose.msra.mxu0 0
        %1445 = vmatprep.subr.bf16.mxu0 0
        %1446 = vmatpush2.bf16.xpose.msra.mxu0 0
        %1447 = vmatprep.subr.bf16.mxu0 0
        %1448 = vmatpush2.bf16.xpose.msra.mxu0 0
        %1449 = vmatprep.subr.bf16.mxu0 0
        %1450 = vmatpush2.bf16.xpose.msra.mxu0 0
        %1451 = vmatprep.subr.bf16.mxu0 0
        %1452 = vmatpush2.bf16.xpose.msra.mxu0 0
        %1453 = vmatprep.subr.bf16.mxu0 0
        %1454 = vmatpush2.bf16.xpose.msra.mxu0 0
        %1455 = vmatprep.subr.bf16.mxu0 0
        %1456 = vmatpush2.bf16.xpose.msra.mxu0 0
        %1457 = vmatprep.mubr.bf16.mxu0 0
        %1458 = vmatmul.mubr.bf16.gmra.mxu0 %v1420
        %v1459 = vpop.f32.mrf.mxu0
        %v1460 = vadd.f32 %v1096, %v1459
        %v1461 = vpop.f32.mrf.mxu0
        %v1462 = vpop.f32.mrf.mxu0
        %v1463 = vadd.f32 %v1097, %v1462
        %v1464 = vpop.f32.mrf.mxu0
        %1465 = vdwg.mxu0
        %v1466 = vsel %vm1153, %v1460, -inf
        %1467 = vmax.xlane.f32.xlu0 %v1466
        %v1468 = vpop.xlane.xlu0 %1467
        %v1469 = vsel %vm1153, %v1463, -inf
        %1470 = vmax.xlane.f32.xlu0 %v1469
        %v1471 = vpop.xlane.xlu0 %1470
        %v1472 = vsub.f32 %v1460, %v1468
        %v1473 = vsub.f32 %v1463, %v1471
        %v1474 = vmul.f32 %v1472, 1.442695
        %v1475 = vpow.pop %v1474
        %v1476 = vmul.f32 %v1473, 1.442695
        %v1477 = vpow.pop %v1476
        %v1478 = vsel %vm1153, %v1475, 0.0
        %1479 = vadd.xlane.f32.xlu0 %v1478
        %v1480 = vpop.xlane.xlu0 %1479
        %v1481 = vsel %vm1153, %v1477, 0.0
        %1482 = vadd.xlane.f32.xlu0 %v1481
        %v1483 = vpop.xlane.xlu0 %1482
        %v1484 = vrcp.pop %v1480
        %v1485 = vrcp.pop %v1483
        %v1486 = vmul.f32 %v1475, %v1484
        %v1487 = vmul.f32 %v1477, %v1485
        %v1488 = vpack.c.bf16 %v1487, %v1486
        %v1490 = vunpack.c.l.b16 %v1488
        %v1491 = vunpack.c.h.b16 %v1488
        %v1492 = vpack.c.b16 %v1490, %v1490
        %v1493 = vpack.c.b16 %v1491, %v1491
        %s1496 = scalar_lea.vmem %s655, 16 [#allocation18]
        %1497 = vst.msk [vmem:[%s1496] sm:$0xf] %vm1184, %v1492
        %1498 = vst.msk [vmem:[%s1496 + $0x4] sm:$0xf] %vm1184, %v1493
        %s1499 = scalar_lea.vmem [#allocation3], 16
        %v1500 = vld [vmem:[%s1499] sm:$0xf]
        %v1501 = vld [vmem:[%s1499 + $0x4] sm:$0xf]
        %v1504 = vunpack.c.l.b16 %v1500
        %v1505 = vunpack.c.l.b16 %v1501
        %v1506 = vpack.c.b16 %v1505, %v1504
        %v1509 = vsel %vm1153, %v1488, 0
        %1511 = vmatprep.subr.bf16.mxu0 0
        %1512 = vmatpush1.bf16.msra.mxu0 0
        %1513 = vmatprep.subr.bf16.mxu0 0
        %1514 = vmatpush1.bf16.msra.mxu0 0
        %1515 = vmatprep.subr.bf16.mxu0 0
        %1516 = vmatpush1.bf16.msra.mxu0 0
        %1517 = vmatprep.subr.bf16.mxu0 0
        %1518 = vmatpush1.bf16.msra.mxu0 0
        %1519 = vmatprep.subr.bf16.mxu0 0
        %1520 = vmatpush1.bf16.msra.mxu0 0
        %1521 = vmatprep.subr.bf16.mxu0 0
        %1522 = vmatpush1.bf16.msra.mxu0 0
        %1523 = vmatprep.subr.bf16.mxu0 0
        %1524 = vmatpush1.bf16.msra.mxu0 0
        %1525 = vmatprep.subr.bf16.mxu0 0
        %1526 = vmatpush1.bf16.msra.mxu0 %v1506
        %1527 = vmatprep.subr.bf16.mxu0 0
        %1528 = vmatpush2.bf16.msra.mxu0 0
        %1529 = vmatprep.subr.bf16.mxu0 0
        %1530 = vmatpush2.bf16.msra.mxu0 0
        %1531 = vmatprep.subr.bf16.mxu0 0
        %1532 = vmatpush2.bf16.msra.mxu0 0
        %1533 = vmatprep.subr.bf16.mxu0 0
        %1534 = vmatpush2.bf16.msra.mxu0 0
        %1535 = vmatprep.subr.bf16.mxu0 0
        %1536 = vmatpush2.bf16.msra.mxu0 0
        %1537 = vmatprep.subr.bf16.mxu0 0
        %1538 = vmatpush2.bf16.msra.mxu0 0
        %1539 = vmatprep.subr.bf16.mxu0 0
        %1540 = vmatpush2.bf16.msra.mxu0 0
        %1541 = vmatprep.subr.bf16.mxu0 0
        %1542 = vmatpush2.bf16.msra.mxu0 0
        %1543 = vmatprep.mubr.bf16.mxu0 0
        %1544 = vmatmul.mubr.bf16.gmra.mxu0 %v1509
        %v1545 = vpop.f32.mrf.mxu0
        %v1546 = vadd.f32 0.0, %v1545
        %v1547 = vpop.f32.mrf.mxu0
        %v1548 = vpop.f32.mrf.mxu0
        %v1549 = vadd.f32 0.0, %v1548
        %v1550 = vpop.f32.mrf.mxu0
        %1551 = vdwg.mxu0
        %v1552 = vpack.c.bf16 %v1549, %v1546
        %v1554 = vunpack.c.l.b16 %v1552
        %v1555 = vunpack.c.h.b16 %v1552
        %v1556 = vpack.c.b16 %v1554, %v1554
        %v1557 = vpack.c.b16 %v1555, %v1555
        %1558 = vrot.lane.b32.xlu0 %v1556, 64
        %v1559 = vpop.permute.xlu0 %1558
        %1560 = vrot.lane.b32.xlu0 %v1557, 64
        %v1561 = vpop.permute.xlu0 %1560
        %vm1564 = vcmask 781824
        %1565 = vst.msk [vmem:[#allocation4] sm:$0xf] %vm1564, %v1559
        %1566 = vst.msk [vmem:[#allocation4 + $0x4] sm:$0xf] %vm1564, %v1561
        %s1567 = scalar_lea.vmem [#allocation2], 24
        %v1568 = vld [vmem:[%s1567] sm:$0xf]
        %v1569 = vld [vmem:[%s1567 + $0x4] sm:$0xf]
        %1570 = vrot.lane.b32.xlu0 %v1089, 32
        %v1571 = vpop.permute.xlu0 %1570
        %v1574 = vunpack.c.l.b16 %v1568
        %v1575 = vunpack.c.l.b16 %v1569
        %v1576 = vpack.c.b16 %v1575, %v1574
        %v1578 = vsel %vm1105, %v1571, 0
        %v1581 = vsel %vm1105, %v1576, 0
        %1583 = vmatprep.subr.bf16.mxu0 0
        %1584 = vmatpush1.bf16.xpose.msra.mxu0 0
        %1585 = vmatprep.subr.bf16.mxu0 0
        %1586 = vmatpush1.bf16.xpose.msra.mxu0 0
        %1587 = vmatprep.subr.bf16.mxu0 0
        %1588 = vmatpush1.bf16.xpose.msra.mxu0 0
        %1589 = vmatprep.subr.bf16.mxu0 0
        %1590 = vmatpush1.bf16.xpose.msra.mxu0 0
        %1591 = vmatprep.subr.bf16.mxu0 0
        %1592 = vmatpush1.bf16.xpose.msra.mxu0 0
        %1593 = vmatprep.subr.bf16.mxu0 0
        %1594 = vmatpush1.bf16.xpose.msra.mxu0 0
        %1595 = vmatprep.subr.bf16.mxu0 0
        %1596 = vmatpush1.bf16.xpose.msra.mxu0 0
        %1597 = vmatprep.subr.bf16.mxu0 0
        %1598 = vmatpush1.bf16.xpose.msra.mxu0 %v1581
        %1599 = vmatprep.subr.bf16.mxu0 0
        %1600 = vmatpush2.bf16.xpose.msra.mxu0 0
        %1601 = vmatprep.subr.bf16.mxu0 0
        %1602 = vmatpush2.bf16.xpose.msra.mxu0 0
        %1603 = vmatprep.subr.bf16.mxu0 0
        %1604 = vmatpush2.bf16.xpose.msra.mxu0 0
        %1605 = vmatprep.subr.bf16.mxu0 0
        %1606 = vmatpush2.bf16.xpose.msra.mxu0 0
        %1607 = vmatprep.subr.bf16.mxu0 0
        %1608 = vmatpush2.bf16.xpose.msra.mxu0 0
        %1609 = vmatprep.subr.bf16.mxu0 0
        %1610 = vmatpush2.bf16.xpose.msra.mxu0 0
        %1611 = vmatprep.subr.bf16.mxu0 0
        %1612 = vmatpush2.bf16.xpose.msra.mxu0 0
        %1613 = vmatprep.subr.bf16.mxu0 0
        %1614 = vmatpush2.bf16.xpose.msra.mxu0 0
        %1615 = vmatprep.mubr.bf16.mxu0 0
        %1616 = vmatmul.mubr.bf16.gmra.mxu0 %v1578
        %v1617 = vpop.f32.mrf.mxu0
        %v1618 = vadd.f32 %v1096, %v1617
        %v1619 = vpop.f32.mrf.mxu0
        %v1620 = vpop.f32.mrf.mxu0
        %v1621 = vadd.f32 %v1097, %v1620
        %v1622 = vpop.f32.mrf.mxu0
        %1623 = vdwg.mxu0
        %v1624 = vsel %vm1153, %v1618, -inf
        %1625 = vmax.xlane.f32.xlu0 %v1624
        %v1626 = vpop.xlane.xlu0 %1625
        %v1627 = vsel %vm1153, %v1621, -inf
        %1628 = vmax.xlane.f32.xlu0 %v1627
        %v1629 = vpop.xlane.xlu0 %1628
        %v1630 = vsub.f32 %v1618, %v1626
        %v1631 = vsub.f32 %v1621, %v1629
        %v1632 = vmul.f32 %v1630, 1.442695
        %v1633 = vpow.pop %v1632
        %v1634 = vmul.f32 %v1631, 1.442695
        %v1635 = vpow.pop %v1634
        %v1636 = vsel %vm1153, %v1633, 0.0
        %1637 = vadd.xlane.f32.xlu0 %v1636
        %v1638 = vpop.xlane.xlu0 %1637
        %v1639 = vsel %vm1153, %v1635, 0.0
        %1640 = vadd.xlane.f32.xlu0 %v1639
        %v1641 = vpop.xlane.xlu0 %1640
        %v1642 = vrcp.pop %v1638
        %v1643 = vrcp.pop %v1641
        %v1644 = vmul.f32 %v1633, %v1642
        %v1645 = vmul.f32 %v1635, %v1643
        %v1646 = vpack.c.bf16 %v1645, %v1644
        %v1648 = vunpack.c.l.b16 %v1646
        %v1649 = vunpack.c.h.b16 %v1646
        %v1650 = vpack.c.b16 %v1648, %v1648
        %v1651 = vpack.c.b16 %v1649, %v1649
        %s1654 = scalar_lea.vmem %s655, 24 [#allocation18]
        %1655 = vst.msk [vmem:[%s1654] sm:$0xf] %vm1184, %v1650
        %1656 = vst.msk [vmem:[%s1654 + $0x4] sm:$0xf] %vm1184, %v1651
        %s1657 = scalar_lea.vmem [#allocation3], 24
        %v1658 = vld [vmem:[%s1657] sm:$0xf]
        %v1659 = vld [vmem:[%s1657 + $0x4] sm:$0xf]
        %v1662 = vunpack.c.l.b16 %v1658
        %v1663 = vunpack.c.l.b16 %v1659
        %v1664 = vpack.c.b16 %v1663, %v1662
        %v1667 = vsel %vm1153, %v1646, 0
        %1669 = vmatprep.subr.bf16.mxu0 0
        %1670 = vmatpush1.bf16.msra.mxu0 0
        %1671 = vmatprep.subr.bf16.mxu0 0
        %1672 = vmatpush1.bf16.msra.mxu0 0
        %1673 = vmatprep.subr.bf16.mxu0 0
        %1674 = vmatpush1.bf16.msra.mxu0 0
        %1675 = vmatprep.subr.bf16.mxu0 0
        %1676 = vmatpush1.bf16.msra.mxu0 0
        %1677 = vmatprep.subr.bf16.mxu0 0
        %1678 = vmatpush1.bf16.msra.mxu0 0
        %1679 = vmatprep.subr.bf16.mxu0 0
        %1680 = vmatpush1.bf16.msra.mxu0 0
        %1681 = vmatprep.subr.bf16.mxu0 0
        %1682 = vmatpush1.bf16.msra.mxu0 0
        %1683 = vmatprep.subr.bf16.mxu0 0
        %1684 = vmatpush1.bf16.msra.mxu0 %v1664
        %1685 = vmatprep.subr.bf16.mxu0 0
        %1686 = vmatpush2.bf16.msra.mxu0 0
        %1687 = vmatprep.subr.bf16.mxu0 0
        %1688 = vmatpush2.bf16.msra.mxu0 0
        %1689 = vmatprep.subr.bf16.mxu0 0
        %1690 = vmatpush2.bf16.msra.mxu0 0
        %1691 = vmatprep.subr.bf16.mxu0 0
        %1692 = vmatpush2.bf16.msra.mxu0 0
        %1693 = vmatprep.subr.bf16.mxu0 0
        %1694 = vmatpush2.bf16.msra.mxu0 0
        %1695 = vmatprep.subr.bf16.mxu0 0
        %1696 = vmatpush2.bf16.msra.mxu0 0
        %1697 = vmatprep.subr.bf16.mxu0 0
        %1698 = vmatpush2.bf16.msra.mxu0 0
        %1699 = vmatprep.subr.bf16.mxu0 0
        %1700 = vmatpush2.bf16.msra.mxu0 0
        %1701 = vmatprep.mubr.bf16.mxu0 0
        %1702 = vmatmul.mubr.bf16.gmra.mxu0 %v1667
        %v1703 = vpop.f32.mrf.mxu0
        %v1704 = vadd.f32 0.0, %v1703
        %v1705 = vpop.f32.mrf.mxu0
        %v1706 = vpop.f32.mrf.mxu0
        %v1707 = vadd.f32 0.0, %v1706
        %v1708 = vpop.f32.mrf.mxu0
        %1709 = vdwg.mxu0
        %v1710 = vpack.c.bf16 %v1707, %v1704
        %v1712 = vunpack.c.l.b16 %v1710
        %v1713 = vunpack.c.h.b16 %v1710
        %v1714 = vpack.c.b16 %v1712, %v1712
        %v1715 = vpack.c.b16 %v1713, %v1713
        %1716 = vrot.lane.b32.xlu0 %v1714, 96
        %v1717 = vpop.permute.xlu0 %1716
        %1718 = vrot.lane.b32.xlu0 %v1715, 96
        %v1719 = vpop.permute.xlu0 %1718
        %vm1722 = vcmask 1044224
        %1723 = vst.msk [vmem:[#allocation4] sm:$0xf] %vm1722, %v1717
        %1724 = vst.msk [vmem:[#allocation4 + $0x4] sm:$0xf] %vm1722, %v1719
        %v1725 = vld [vmem:[#allocation4] sm:$0xf]
        %v1726 = vld [vmem:[#allocation4 + $0x4] sm:$0xf]
        %v1727 = vld [vmem:[#allocation16] sm:$0xf]
        %v1728 = vld [vmem:[#allocation16 + $0x4] sm:$0xf]
        %v1729 = vld [vmem:[#allocation16 + $0x8] sm:$0xf]
        %v1730 = vld [vmem:[#allocation16 + $0xc] sm:$0xf]
        %v1731 = vld [vmem:[#allocation16 + $0x10] sm:$0xf]
        %v1732 = vld [vmem:[#allocation16 + $0x14] sm:$0xf]
        %v1733 = vld [vmem:[#allocation16 + $0x18] sm:$0xf]
        %v1734 = vld [vmem:[#allocation16 + $0x1c] sm:$0xf]
        %v1735 = vld [vmem:[#allocation16 + $0x20] sm:$0xf]
        %v1736 = vld [vmem:[#allocation16 + $0x24] sm:$0xf]
        %v1737 = vld [vmem:[#allocation16 + $0x28] sm:$0xf]
        %v1738 = vld [vmem:[#allocation16 + $0x2c] sm:$0xf]
        %v1739 = vld [vmem:[#allocation16 + $0x30] sm:$0xf]
        %v1740 = vld [vmem:[#allocation16 + $0x34] sm:$0xf]
        %v1741 = vld [vmem:[#allocation16 + $0x38] sm:$0xf]
        %v1742 = vld [vmem:[#allocation16 + $0x3c] sm:$0xf]
        %v1743 = vld [vmem:[%s10] sm:$0x1]
        %v1745 = vlaneseq
        %v1746 = vshrl.u32 %v1745, 7
        %v1747 = vsub.s32 0, %v1746
        %v1748 = vrot.slane %v1743, %v1747
        %v1752 = vunpack.c.l.b16 %v1725
        %v1753 = vunpack.c.l.b16 %v1726
        %v1754 = vpack.c.b16 %v1753, %v1752
        %v1772 = vunpack.c.l.b16 %v1727
        %v1773 = vunpack.c.l.b16 %v1728
        %v1774 = vunpack.c.l.b16 %v1729
        %v1775 = vunpack.c.l.b16 %v1730
        %v1776 = vunpack.c.l.b16 %v1731
        %v1777 = vunpack.c.l.b16 %v1732
        %v1778 = vunpack.c.l.b16 %v1733
        %v1779 = vunpack.c.l.b16 %v1734
        %v1780 = vunpack.c.l.b16 %v1735
        %v1781 = vunpack.c.l.b16 %v1736
        %v1782 = vunpack.c.l.b16 %v1737
        %v1783 = vunpack.c.l.b16 %v1738
        %v1784 = vunpack.c.l.b16 %v1739
        %v1785 = vunpack.c.l.b16 %v1740
        %v1786 = vunpack.c.l.b16 %v1741
        %v1787 = vunpack.c.l.b16 %v1742
        %v1788 = vpack.c.b16 %v1773, %v1772
        %v1789 = vpack.c.b16 %v1775, %v1774
        %v1790 = vpack.c.b16 %v1777, %v1776
        %v1791 = vpack.c.b16 %v1779, %v1778
        %v1792 = vpack.c.b16 %v1781, %v1780
        %v1793 = vpack.c.b16 %v1783, %v1782
        %v1794 = vpack.c.b16 %v1785, %v1784
        %v1795 = vpack.c.b16 %v1787, %v1786
        %1804 = vmatprep.subr.bf16.mxu0 0
        %1805 = vmatpush1.bf16.msra.mxu0 %v1795
        %1806 = vmatprep.subr.bf16.mxu0 0
        %1807 = vmatpush1.bf16.msra.mxu0 %v1794
        %1808 = vmatprep.subr.bf16.mxu0 0
        %1809 = vmatpush1.bf16.msra.mxu0 %v1793
        %1810 = vmatprep.subr.bf16.mxu0 0
        %1811 = vmatpush1.bf16.msra.mxu0 %v1792
        %1812 = vmatprep.subr.bf16.mxu0 0
        %1813 = vmatpush1.bf16.msra.mxu0 %v1791
        %1814 = vmatprep.subr.bf16.mxu0 0
        %1815 = vmatpush1.bf16.msra.mxu0 %v1790
        %1816 = vmatprep.subr.bf16.mxu0 0
        %1817 = vmatpush1.bf16.msra.mxu0 %v1789
        %1818 = vmatprep.subr.bf16.mxu0 0
        %1819 = vmatpush1.bf16.msra.mxu0 %v1788
        %1820 = vmatprep.subr.bf16.mxu0 0
        %1821 = vmatpush2.bf16.msra.mxu0 0
        %1822 = vmatprep.subr.bf16.mxu0 0
        %1823 = vmatpush2.bf16.msra.mxu0 0
        %1824 = vmatprep.subr.bf16.mxu0 0
        %1825 = vmatpush2.bf16.msra.mxu0 0
        %1826 = vmatprep.subr.bf16.mxu0 0
        %1827 = vmatpush2.bf16.msra.mxu0 0
        %1828 = vmatprep.subr.bf16.mxu0 0
        %1829 = vmatpush2.bf16.msra.mxu0 0
        %1830 = vmatprep.subr.bf16.mxu0 0
        %1831 = vmatpush2.bf16.msra.mxu0 0
        %1832 = vmatprep.subr.bf16.mxu0 0
        %1833 = vmatpush2.bf16.msra.mxu0 0
        %1834 = vmatprep.subr.bf16.mxu0 0
        %1835 = vmatpush2.bf16.msra.mxu0 0
        %1836 = vmatprep.mubr.bf16.mxu0 0
        %1837 = vmatmul.mubr.bf16.gmra.mxu0 %v1754
        %v1838 = vpop.f32.mrf.mxu0
        %v1839 = vadd.f32 %v1748, %v1838
        %v1840 = vpop.f32.mrf.mxu0
        %v1841 = vpop.f32.mrf.mxu0
        %v1842 = vadd.f32 %v1748, %v1841
        %v1843 = vpop.f32.mrf.mxu0
        %1844 = vdwg.mxu0
        %v1845 = vadd.f32 %v1839, %v972
        %v1846 = vadd.f32 %v1842, %v973
        %1847 = vadd.xlane.f32.xlu0 %v1845
        %v1848 = vpop.xlane.xlu0 %1847
        %1849 = vadd.xlane.f32.xlu0 %v1846
        %v1850 = vpop.xlane.xlu0 %1849
        %v1851 = vrcp.pop 128.0
        %v1852 = vmul.f32 %v1848, %v1851
        %v1853 = vmul.f32 %v1850, %v1851
        %v1854 = vsub.f32 %v1845, %v1852
        %v1855 = vsub.f32 %v1846, %v1853
        %v1856 = vmul.f32 %v1854, %v1854
        %v1857 = vmul.f32 %v1855, %v1855
        %1858 = vadd.xlane.f32.xlu0 %v1856
        %v1859 = vpop.xlane.xlu0 %1858
        %1860 = vadd.xlane.f32.xlu0 %v1857
        %v1861 = vpop.xlane.xlu0 %1860
        %v1862 = vmul.f32 %v1859, %v1851
        %v1863 = vmul.f32 %v1861, %v1851
        %v1864 = vadd.f32 %v1862, 1e-05
        %v1865 = vadd.f32 %v1863, 1e-05
        %v1866 = vrsqrt.pop %v1864
        %v1867 = vrsqrt.pop %v1865
        %v1868 = vmul.f32 %v1854, %v1866
        %v1869 = vmul.f32 %v1855, %v1867
        %v1870 = vld [vmem:[%s11] sm:$0x1]
        %v1872 = vlaneseq
        %v1873 = vshrl.u32 %v1872, 7
        %v1874 = vsub.s32 0, %v1873
        %v1875 = vrot.slane %v1870, %v1874
        %v1877 = vmul.f32 %v1868, %v1875
        %v1878 = vmul.f32 %v1869, %v1875
        %v1879 = vld [vmem:[%s12] sm:$0x1]
        %v1881 = vlaneseq
        %v1882 = vshrl.u32 %v1881, 7
        %v1883 = vsub.s32 0, %v1882
        %v1884 = vrot.slane %v1879, %v1883
        %v1886 = vadd.f32 %v1877, %v1884
        %v1887 = vadd.f32 %v1878, %v1884
        %1888 = vst [vmem:[%s648] sm:$0xff] %v1886
        %1889 = vst [vmem:[%s648 + $0x8] sm:$0xff] %v1887
        %s1890 = sand.u32 %s354, 1
        %s1891 = scalar_lea.sflag [#allocation7], %s1890
        %s1892 = sand.u32 %s354, 1
        %s1893 = smul.addr %s1892, 16
        %s1894 = scalar_lea.vmem [#allocation17], %s1893
        %s1895 = sand.u32 %s382, 1
        %s1896 = scalar_lea.sflag [#allocation19], %s1895
        %s1897 = sand.u32 %s382, 1
        %s1898 = smul.addr %s1897, 32
        %s1899 = scalar_lea.vmem [#allocation18], %s1898
        // Predicated region
        $region105: #{tpu_custom_call.1} parent=71 // pred_check
          %p1900 = pneg %p364
        $region106: #{tpu_custom_call.1} parent=71 // pred_check_branch
          %1902 = sbr.rel (%p1900) target = $region108
        $region107: #{tpu_custom_call.1} parent=71 // pred_region
          %s1903 = smul.u32 2, %s45
          %s1905 = ssub.s32 256, 256
          %1906 = vsyncadd %s1891, %s1905
          %s1907 = smul.addr %s44, 2
          %s1908 = sadd.s32 %s1903, %s1907
          %s1909 = smul.addr %s1908, 128
          %s1910 = scalar_lea.hbm %s13, %s1909
          %s1911 = sshll.u32 %s1894, 4
          %s1912 = int_to_ptr.vmem [resolvable:$true] %s1911
          %1917 = dma.vmem_to_hbm [thread:$0]  %s1912, 256, %s1910, %s1891, 128, 128, 8
        $region108: #{tpu_custom_call.1} parent=71 // pred_fallthru
          _
        // Predicated region
        $region109: #{tpu_custom_call.1} parent=71 // pred_check
          %p1918 = pneg %p392
        $region110: #{tpu_custom_call.1} parent=71 // pred_check_branch
          %1920 = sbr.rel (%p1918) target = $region112
        $region111: #{tpu_custom_call.1} parent=71 // pred_region
          %s1921 = smul.u32 2, %s45
          %s1923 = ssub.s32 512, 512
          %1924 = vsyncadd %s1896, %s1923
          %s1925 = smul.addr %s44, 8
          %s1926 = sadd.s32 %s1921, %s1925
          %s1927 = smul.addr %s1926, 64
          %s1928 = scalar_lea.hbm %s14, %s1927
          %s1929 = sshll.u32 %s1899, 4
          %s1930 = int_to_ptr.vmem [resolvable:$true] %s1929
          %1935 = dma.vmem_to_hbm [thread:$0]  %s1930, 512, %s1928, %s1896, 64, 64, 4
        $region112: #{tpu_custom_call.1} parent=71 // pred_fallthru
          _
      $region72: #{tpu_custom_call.1} parent=5 // pred_fallthru
        _
      %p1936 = scmp.le.s32.totalorder 2, %s35
      // Predicated region
      $region113: #{tpu_custom_call.1} parent=5 // pred_check
        %p1937 = pneg %p1936
      $region114: #{tpu_custom_call.1} parent=5 // pred_check_branch
        %1939 = sbr.rel (%p1937) target = $region116
      $region115: #{tpu_custom_call.1} parent=5 // pred_region
        %s1940 = ssub.s32 %s35, 2
        // Predicated region
        $region117: #{tpu_custom_call.1} parent=115 // pred_check
          %p1941 = pneg %p370
        $region118: #{tpu_custom_call.1} parent=115 // pred_check_branch
          %1943 = sbr.rel (%p1941) target = $region120
        $region119: #{tpu_custom_call.1} parent=115 // pred_region
          %s1944 = sand.u32 %s355, 1
          %s1945 = scalar_lea.sflag [#allocation7], %s1944
          %s1946 = sand.u32 %s355, 1
          %s1947 = smul.addr %s1946, 16
          %s1948 = scalar_lea.vmem [#allocation17], %s1947
          %1949 = dma.done %s1945, 256
        $region120: #{tpu_custom_call.1} parent=115 // pred_fallthru
          _
        // Predicated region
        $region121: #{tpu_custom_call.1} parent=115 // pred_check
          %p1950 = pneg %p398
        $region122: #{tpu_custom_call.1} parent=115 // pred_check_branch
          %1952 = sbr.rel (%p1950) target = $region124
        $region123: #{tpu_custom_call.1} parent=115 // pred_region
          %s1953 = sand.u32 %s383, 1
          %s1954 = scalar_lea.sflag [#allocation19], %s1953
          %s1955 = sand.u32 %s383, 1
          %s1956 = smul.addr %s1955, 32
          %s1957 = scalar_lea.vmem [#allocation18], %s1956
          %1958 = dma.done %s1954, 512
        $region124: #{tpu_custom_call.1} parent=115 // pred_fallthru
          _
      $region116: #{tpu_custom_call.1} parent=5 // pred_fallthru
        _
    $region6: #{tpu_custom_call.1} parent=1 // loop_footer
      %s39 = sadd.s32 1, %s35
    $region7: #{tpu_custom_call.1} parent=1 // loop_footer_branch
      %34 = sbr.rel target = $region3
    $region8: #{tpu_custom_call.1} parent=1 // loop_exit
      _
    %1959 = vsyncpa [#allocation6], 1
    %s1960 = scalar_lea.sflag [#allocation6], 1
    %1961 = vsyncpa %s1960, 1
    %1962 = vsyncpa [#allocation9], 1
    %s1963 = scalar_lea.sflag [#allocation9], 1
    %1964 = vsyncpa %s1963, 1
    %1965 = vsyncpa [#allocation12], 1
    %1966 = vsyncpa [#allocation15], 1
    %1967 = vsyncpa [#allocation7], 1
    %s1968 = scalar_lea.sflag [#allocation7], 1
    %1969 = vsyncpa %s1968, 1
    %1970 = vsyncpa [#allocation19], 1
    %s1971 = scalar_lea.sflag [#allocation19], 1
    %1972 = vsyncpa %s1971, 1

</llo_original>
